<compile_context>
chip_gen: v5e
topology: v5e:2x2
jax: 0.10.0
libtpu: 0.0.40
codegen_flags: <defaults>
</compile_context>

<pallas_src>
import math

import jax
import jax.numpy as jnp
from jax import lax
from jax.experimental import pallas as pl
from jax.experimental.pallas import tpu as pltpu

F32 = jnp.float32
BF16 = jnp.bfloat16
OLEN = 512      # fixed by GCNLayer(olen=512) / the hard-coded reshape (1, 200*512)
HDIM = 200      # GCNLayer hidden/out dim and TransformerLayer d_model
NHEAD = 2
HEAD_DIM = HDIM // NHEAD     # 100 (real)
HPAD = 128                   # zero-padded head dim (lane aligned)
FFN = 2048                   # nn.TransformerEncoderLayer default dim_feedforward

_VMEM = pl.BlockSpec(memory_space=pltpu.MemorySpace.VMEM)


def _cp(mb, **kw):
    return pltpu.CompilerParams(vmem_limit_bytes=mb * 1024 * 1024, **kw)


# --------------------------------------------------------------------------------------
# Fused: 3x [GATConv -> ReLU -> dropout(0.2)] + SAGPooling GraphConv score, single kernel
# --------------------------------------------------------------------------------------
def _gat_sag_kernel(x_ref, adj_ref, adjsl_ref, mask_ref,
                    w0_ref, asrc0_ref, adst0_ref, b0_ref,
                    w1_ref, asrc1_ref, adst1_ref, b1_ref,
                    w2_ref, asrc2_ref, adst2_ref, b2_ref,
                    wrel_ref, brel_ref, wroot_ref,
                    h_out_ref, score_out_ref):
    adj = adj_ref[...]          # (N, N) no self-loops (for SAG GraphConv aggregation)
    adj_sl = adjsl_ref[...]     # (N, N) with self-loops (GATConv adds them)
    h = x_ref[...]
    layers = ((w0_ref, asrc0_ref, adst0_ref, b0_ref),
              (w1_ref, asrc1_ref, adst1_ref, b1_ref),
              (w2_ref, asrc2_ref, adst2_ref, b2_ref))
    for li, (w_ref, asrc_ref, adst_ref, b_ref) in enumerate(layers):
        hw = jnp.dot(h, w_ref[...], preferred_element_type=F32)             # (N, 200)
        # attention logits e[i, j] = LeakyReLU(a_dst . h_i + a_src . h_j, slope=0.2)
        s_dst = jnp.sum(hw * adst_ref[...], axis=-1, keepdims=True)         # (N, 1) VPU + lane reduce
        s_src = lax.dot_general(asrc_ref[...], hw, (((1,), (1,)), ((), ())),
                                preferred_element_type=F32)                 # (1, N)
        logits = s_dst + s_src
        logits = jnp.where(logits >= 0.0, logits, 0.2 * logits)
        masked = jnp.where(adj_sl > 0.5, logits, -1e30)
        m = jnp.max(masked, axis=-1, keepdims=True)
        e = jnp.exp(masked - m) * adj_sl
        alpha = e / jnp.sum(e, axis=-1, keepdims=True)                      # softmax over in-edges
        out = jnp.dot(alpha, hw, preferred_element_type=F32) + b_ref[...]
        out = jnp.maximum(out, 0.0)                                         # ReLU
        h = out * mask_ref[li]                                              # dropout p=0.2 (pre-scaled mask)
    h_out_ref[...] = h
    # SAGPooling score = GraphConv(200, 1): W_rel . (sum_{j->i} h_j) + b + W_root . h_i
    agg = jnp.dot(adj, h, preferred_element_type=F32)
    score = (jnp.sum(agg * wrel_ref[...], axis=-1, keepdims=True) + brel_ref[...]
             + jnp.sum(h * wroot_ref[...], axis=-1, keepdims=True))
    score_out_ref[...] = score


def gat_and_sag_score(x, adj, adj_sl, masks, gps, sp):
    n = x.shape[0]
    return pl.pallas_call(
        _gat_sag_kernel,
        out_shape=(jax.ShapeDtypeStruct((n, HDIM), F32),
                   jax.ShapeDtypeStruct((n, 1), F32)),
        in_specs=[_VMEM] * 19,
        out_specs=(_VMEM, _VMEM),
        compiler_params=_cp(32),
    )(x, adj, adj_sl, masks,
      gps[0]['w'], gps[0]['a_src'], gps[0]['a_dst'], gps[0]['b'],
      gps[1]['w'], gps[1]['a_src'], gps[1]['a_dst'], gps[1]['b'],
      gps[2]['w'], gps[2]['a_src'], gps[2]['a_dst'], gps[2]['b'],
      sp['w_rel'], sp['b_rel'], sp['w_root'])


# --------------------------------------------------------------------------------------
# 8x nn.TransformerEncoderLayer (post-norm, ReLU FFN, nhead=2) fused in one gridded call.
# Per-layer weights are stacked on a leading axis and streamed (double-buffered) by BlockSpec;
# x stays resident in a VMEM scratch across the grid.
# --------------------------------------------------------------------------------------
_ENC_NAMES = ['wq', 'wk', 'wv', 'bq', 'bk', 'bv', 'wo', 'bo', 'g1', 'be1',
              'w1', 'b1', 'w2', 'b2', 'g2', 'be2']


def _encoder_stack_kernel(x_ref, wq_ref, wk_ref, wv_ref, bq_ref, bk_ref, bv_ref,
                          wo_ref, bo_ref, g1_ref, be1_ref,
                          w1_ref, b1_ref, w2_ref, b2_ref, g2_ref, be2_ref,
                          o_ref, xs_ref):
    l = pl.program_id(0)

    @pl.when(l == 0)
    def _():
        xs_ref[...] = x_ref[...]

    x = xs_ref[...]                                                     # (512, 200) f32
    xb = x.astype(BF16)
    q = jnp.dot(xb, wq_ref[...], preferred_element_type=F32) + bq_ref[...]   # (512, 256)
    k = jnp.dot(xb, wk_ref[...], preferred_element_type=F32) + bk_ref[...]
    v = jnp.dot(xb, wv_ref[...], preferred_element_type=F32) + bv_ref[...]
    scale = 1.0 / math.sqrt(HEAD_DIM)                                   # real head_dim = 100
    heads = []
    for h in range(NHEAD):                                              # static head loop
        sl = slice(h * HPAD, (h + 1) * HPAD)
        qh = q[:, sl].astype(BF16)
        kh = k[:, sl].astype(BF16)
        vh = v[:, sl].astype(BF16)
        s = lax.dot_general(qh, kh, (((1,), (1,)), ((), ())),
                            preferred_element_type=F32) * scale         # (512, 512), exact (pads are 0)
        m = jnp.max(s, axis=-1, keepdims=True)
        p = jnp.exp(s - m)
        p = p / jnp.sum(p, axis=-1, keepdims=True)
        heads.append(jnp.dot(p.astype(BF16), vh, preferred_element_type=F32))  # (512, 128)
    o_cat = jnp.concatenate(heads, axis=-1).astype(BF16)                # (512, 256)
    attn = jnp.dot(o_cat, wo_ref[...], preferred_element_type=F32) + bo_ref[...]
    # TODO(synk): TransformerEncoderLayer dropout (p=0.1) omitted (eval-mode semantics).
    y = x + attn
    mu = jnp.mean(y, axis=-1, keepdims=True)
    var = jnp.mean((y - mu) * (y - mu), axis=-1, keepdims=True)
    y = (y - mu) * lax.rsqrt(var + 1e-5) * g1_ref[...] + be1_ref[...]
    hid = jnp.maximum(jnp.dot(y.astype(BF16), w1_ref[...],
                              preferred_element_type=F32) + b1_ref[...], 0.0)   # (512, 2048)
    ff = jnp.dot(hid.astype(BF16), w2_ref[...], preferred_element_type=F32) + b2_ref[...]
    z = y + ff
    mu2 = jnp.mean(z, axis=-1, keepdims=True)
    var2 = jnp.mean((z - mu2) * (z - mu2), axis=-1, keepdims=True)
    xs_ref[...] = (z - mu2) * lax.rsqrt(var2 + 1e-5) * g2_ref[...] + be2_ref[...]

    @pl.when(l == pl.num_programs(0) - 1)
    def _():
        o_ref[...] = xs_ref[...]


def encoder_stack(x, ep):
    num_layers = ep['wq'].shape[0]
    weight_specs = [
        pl.BlockSpec((None,) + tuple(ep[name].shape[1:]), lambda l: (l, 0, 0))
        for name in _ENC_NAMES
    ]
    return pl.pallas_call(
        _encoder_stack_kernel,
        out_shape=jax.ShapeDtypeStruct((OLEN, HDIM), F32),
        grid_spec=pltpu.PrefetchScalarGridSpec(
            num_scalar_prefetch=0,
            grid=(num_layers,),
            in_specs=[pl.BlockSpec((OLEN, HDIM), lambda l: (0, 0))] + weight_specs,
            out_specs=pl.BlockSpec((OLEN, HDIM), lambda l: (0, 0)),
            scratch_shapes=[pltpu.VMEM((OLEN, HDIM), F32)]),
        compiler_params=_cp(32, dimension_semantics=("arbitrary",)),
    )(x, *[ep[name] for name in _ENC_NAMES])


# --------------------------------------------------------------------------------------
# Output head: Linear(200*512, 16) -> ReLU -> Linear(16, 5)
# w1 stored transposed (16, 102400) bf16, K-tiled with a grid so its DMA pipelines.
# --------------------------------------------------------------------------------------
HEAD_KT = 12800   # 102400 / 8


def _head_kernel(x_ref, w1t_ref, b1_ref, w2_ref, b2_ref, o_ref, acc_ref):
    k = pl.program_id(0)

    @pl.when(k == 0)
    def _():
        acc_ref[...] = jnp.zeros_like(acc_ref)

    acc_ref[...] += lax.dot_general(
        x_ref[...].astype(BF16), w1t_ref[...],
        (((1,), (1,)), ((), ())), preferred_element_type=F32)           # (1, 16)

    @pl.when(k == pl.num_programs(0) - 1)
    def _():
        h = jnp.maximum(acc_ref[...] + b1_ref[...], 0.0)
        o_ref[...] = jnp.dot(h, w2_ref[...], preferred_element_type=F32) + b2_ref[...]


def output_head(x_flat, w1t, b1, w2, b2):
    ktot = x_flat.shape[1]
    nk = ktot // HEAD_KT
    odim = w2.shape[1]
    return pl.pallas_call(
        _head_kernel,
        out_shape=jax.ShapeDtypeStruct((1, odim), F32),
        grid_spec=pltpu.PrefetchScalarGridSpec(
            num_scalar_prefetch=0,
            grid=(nk,),
            in_specs=[pl.BlockSpec((1, HEAD_KT), lambda k: (0, k)),
                      pl.BlockSpec((16, HEAD_KT), lambda k: (0, k)),
                      pl.BlockSpec((1, 16), lambda k: (0, 0)),
                      pl.BlockSpec((16, odim), lambda k: (0, 0)),
                      pl.BlockSpec((1, odim), lambda k: (0, 0))],
            out_specs=pl.BlockSpec((1, odim), lambda k: (0, 0)),
            scratch_shapes=[pltpu.VMEM((1, 16), F32)]),
        compiler_params=_cp(16, dimension_semantics=("arbitrary",)),
    )(x_flat, w1t, b1, w2, b2)


# --------------------------------------------------------------------------------------
# Parameter init (deterministic, synthetic) + full forward
# --------------------------------------------------------------------------------------
def init_params(key, idim):
    keys = iter(jax.random.split(key, 256))

    def nrm(shape, scale=0.05):
        return scale * jax.random.normal(next(keys), shape, F32)

    params = {'gat': []}
    for di in (idim, HDIM, HDIM):
        params['gat'].append(dict(w=nrm((di, HDIM)), a_src=nrm((1, HDIM)),
                                  a_dst=nrm((1, HDIM)), b=jnp.zeros((1, HDIM), F32)))
    params['sag'] = dict(w_rel=nrm((1, HDIM)), b_rel=jnp.zeros((1, 1), F32),
                         w_root=nrm((1, HDIM)))

    def qkv_w():   # (200, 256) bf16, cols [h*128 : h*128+100] real, rest zero (exact padding)
        w = nrm((HDIM, NHEAD, HEAD_DIM))
        wp = jnp.zeros((HDIM, NHEAD, HPAD), F32).at[:, :, :HEAD_DIM].set(w)
        return wp.reshape(HDIM, NHEAD * HPAD).astype(BF16)

    def out_w():   # (256, 200) bf16, rows [h*128 : h*128+100] real, rest zero
        w = nrm((NHEAD, HEAD_DIM, HDIM))
        wp = jnp.zeros((NHEAD, HPAD, HDIM), F32).at[:, :HEAD_DIM, :].set(w)
        return wp.reshape(NHEAD * HPAD, HDIM).astype(BF16)

    nlayers = 8
    enc = dict(
        wq=jnp.stack([qkv_w() for _ in range(nlayers)]),
        wk=jnp.stack([qkv_w() for _ in range(nlayers)]),
        wv=jnp.stack([qkv_w() for _ in range(nlayers)]),
        bq=jnp.zeros((nlayers, 1, NHEAD * HPAD), F32),
        bk=jnp.zeros((nlayers, 1, NHEAD * HPAD), F32),
        bv=jnp.zeros((nlayers, 1, NHEAD * HPAD), F32),
        wo=jnp.stack([out_w() for _ in range(nlayers)]),
        bo=jnp.zeros((nlayers, 1, HDIM), F32),
        g1=jnp.ones((nlayers, 1, HDIM), F32), be1=jnp.zeros((nlayers, 1, HDIM), F32),
        w1=jnp.stack([nrm((HDIM, FFN)).astype(BF16) for _ in range(nlayers)]),
        b1=jnp.zeros((nlayers, 1, FFN), F32),
        w2=jnp.stack([nrm((FFN, HDIM)).astype(BF16) for _ in range(nlayers)]),
        b2=jnp.zeros((nlayers, 1, HDIM), F32),
        g2=jnp.ones((nlayers, 1, HDIM), F32), be2=jnp.zeros((nlayers, 1, HDIM), F32))
    params['enc'] = enc

    params['head'] = dict(
        w1t=nrm((16, HDIM * OLEN), 0.01).astype(BF16),   # Linear weight stored (out, in) like torch
        b1=jnp.zeros((1, 16), F32),
        w2=nrm((16, 5)), b2=jnp.zeros((1, 5), F32))
    return params


def hj_locmodel_forward(x, edge_index, params, dropout_key):
    n = x.shape[0]
    src, dst = edge_index[0], edge_index[1]
    # dense adjacency: adj[i, j] = 1 iff edge j -> i (message flows source -> target)
    adj = jnp.zeros((n, n), F32).at[dst, src].set(1.0)
    adj_sl = jnp.maximum(adj, jnp.eye(n, dtype=F32))                    # GATConv adds self-loops

    # F.dropout(p=0.2, training=True) keep-masks, pre-scaled by 1/0.8 (RNG stream differs from torch)
    masks = jax.random.bernoulli(dropout_key, 0.8, (3, n, HDIM)).astype(F32) * (1.0 / 0.8)

    h, score = gat_and_sag_score(x, adj, adj_sl, masks, params['gat'], params['sag'])
    score = score[:, 0]

    # SAGPooling(200, 0.5): with n <= 1024 nodes the PyTorch `while True` loop runs exactly one
    # pooling round before `x.shape[0] <= 512` breaks it.
    # TODO(synk): dynamic-shape multi-round pooling (n > 1024) not expressible statically.
    k = int(math.ceil(0.5 * n))
    top_vals, perm = lax.top_k(score, k)                                # descending, like PyG topk
    hp = h[perm] * jnp.tanh(top_vals)[:, None]
    x512 = jnp.zeros((OLEN, HDIM), F32).at[:k].set(hp)                  # F.pad(..., (0,0,0,512-k))

    x512 = encoder_stack(x512, params['enc'])

    flat = x512.reshape(1, OLEN * HDIM)                                 # torch.reshape(inp, (1, 200*512))
    hd = params['head']
    return output_head(flat, hd['w1t'], hd['b1'], hd['w2'], hd['b2'])


if __name__ == "__main__":
    key = jax.random.PRNGKey(0)
    kx, ks, kd, kp, kdrop = jax.random.split(key, 5)
    N, IDIM, E = 64, 16, 256                                            # small synthetic graph
    x = jax.random.normal(kx, (N, IDIM), F32)
    src = jax.random.randint(ks, (E,), 0, N)
    dst = jax.random.randint(kd, (E,), 0, N)
    edge_index = jnp.stack([src, dst], axis=0)                          # (2, E), PyG convention
    params = init_params(kp, IDIM)

    out = hj_locmodel_forward(x, edge_index, params, kdrop)
    out = jax.block_until_ready(out)
    assert out.shape == (1, 5) and out.dtype == jnp.float32
    assert bool(jnp.all(jnp.isfinite(out)))
    print("KERNEL_OK")
</pallas_src>

<mosaic_0001>
module attributes {stable_mosaic.version = 11 : i64} {
  func.func @_gat_sag_kernel(%arg0: memref<64x16xf32, #tpu.memory_space<vmem>>, %arg1: memref<64x64xf32, #tpu.memory_space<vmem>>, %arg2: memref<64x64xf32, #tpu.memory_space<vmem>>, %arg3: memref<3x64x200xf32, #tpu.memory_space<vmem>>, %arg4: memref<16x200xf32, #tpu.memory_space<vmem>>, %arg5: memref<1x200xf32, #tpu.memory_space<vmem>>, %arg6: memref<1x200xf32, #tpu.memory_space<vmem>>, %arg7: memref<1x200xf32, #tpu.memory_space<vmem>>, %arg8: memref<200x200xf32, #tpu.memory_space<vmem>>, %arg9: memref<1x200xf32, #tpu.memory_space<vmem>>, %arg10: memref<1x200xf32, #tpu.memory_space<vmem>>, %arg11: memref<1x200xf32, #tpu.memory_space<vmem>>, %arg12: memref<200x200xf32, #tpu.memory_space<vmem>>, %arg13: memref<1x200xf32, #tpu.memory_space<vmem>>, %arg14: memref<1x200xf32, #tpu.memory_space<vmem>>, %arg15: memref<1x200xf32, #tpu.memory_space<vmem>>, %arg16: memref<1x200xf32, #tpu.memory_space<vmem>>, %arg17: memref<1x1xf32, #tpu.memory_space<vmem>>, %arg18: memref<1x200xf32, #tpu.memory_space<vmem>>, %arg19: memref<64x200xf32, #tpu.memory_space<vmem>>, %arg20: memref<64x1xf32, #tpu.memory_space<vmem>>) attributes {dimension_semantics = [], scalar_prefetch = 0 : i64, scratch_operands = 0 : i64, tpu.core_type = #tpu.core_type<tc>} {
    %c0 = arith.constant 0 : index
    %c0_0 = arith.constant 0 : index
    %0 = vector.load %arg1[%c0, %c0_0] : memref<64x64xf32, #tpu.memory_space<vmem>>, vector<64x64xf32>
    %c0_1 = arith.constant 0 : index
    %c0_2 = arith.constant 0 : index
    %1 = vector.load %arg2[%c0_1, %c0_2] : memref<64x64xf32, #tpu.memory_space<vmem>>, vector<64x64xf32>
    %c0_3 = arith.constant 0 : index
    %c0_4 = arith.constant 0 : index
    %2 = vector.load %arg0[%c0_3, %c0_4] : memref<64x16xf32, #tpu.memory_space<vmem>>, vector<64x16xf32>
    %c0_5 = arith.constant 0 : index
    %c0_6 = arith.constant 0 : index
    %3 = vector.load %arg4[%c0_5, %c0_6] : memref<16x200xf32, #tpu.memory_space<vmem>>, vector<16x200xf32>
    %cst = arith.constant dense<0.000000e+00> : vector<64x200xf32>
    %4 = tpu.matmul %2, %3, %cst {dimension_numbers = #tpu.dot_dimension_numbers<[1], [0], [0], [1], [0, 0, 1, 1], [], []>} : vector<64x16xf32>, vector<16x200xf32>, vector<64x200xf32> -> vector<64x200xf32>
    %c0_7 = arith.constant 0 : index
    %c0_8 = arith.constant 0 : index
    %5 = vector.load %arg6[%c0_7, %c0_8] : memref<1x200xf32, #tpu.memory_space<vmem>>, vector<1x200xf32>
    %6 = vector.broadcast %5 : vector<1x200xf32> to vector<64x200xf32>
    %7 = arith.mulf %4, %6 : vector<64x200xf32>
    %cst_9 = arith.constant dense<0.000000e+00> : vector<64xf32>
    %8 = vector.multi_reduction <add>, %7, %cst_9 [1] : vector<64x200xf32> to vector<64xf32>
    %9 = vector.shape_cast %8 : vector<64xf32> to vector<64x1xf32>
    %c0_10 = arith.constant 0 : index
    %c0_11 = arith.constant 0 : index
    %10 = vector.load %arg5[%c0_10, %c0_11] : memref<1x200xf32, #tpu.memory_space<vmem>>, vector<1x200xf32>
    %cst_12 = arith.constant dense<0.000000e+00> : vector<1x64xf32>
    %11 = tpu.matmul %10, %4, %cst_12 {dimension_numbers = #tpu.dot_dimension_numbers<[1], [1], [0], [0], [0, 0, 1, 0], [], []>} : vector<1x200xf32>, vector<64x200xf32>, vector<1x64xf32> -> vector<1x64xf32>
    %12 = vector.broadcast %9 : vector<64x1xf32> to vector<64x64xf32>
    %13 = vector.broadcast %11 : vector<1x64xf32> to vector<64x64xf32>
    %14 = arith.addf %12, %13 : vector<64x64xf32>
    %cst_13 = arith.constant 0.000000e+00 : f32
    %15 = vector.broadcast %cst_13 : f32 to vector<64x64xf32>
    %16 = arith.cmpf oge, %14, %15 : vector<64x64xf32>
    %cst_14 = arith.constant 2.000000e-01 : f32
    %17 = vector.broadcast %cst_14 : f32 to vector<64x64xf32>
    %18 = arith.mulf %17, %14 : vector<64x64xf32>
    %19 = arith.select %16, %14, %18 : vector<64x64xi1>, vector<64x64xf32>
    %cst_15 = arith.constant 5.000000e-01 : f32
    %20 = vector.broadcast %cst_15 : f32 to vector<64x64xf32>
    %21 = arith.cmpf ogt, %1, %20 : vector<64x64xf32>
    %cst_16 = arith.constant -1.000000e+30 : f32
    %22 = vector.broadcast %cst_16 : f32 to vector<64x64xf32>
    %23 = arith.select %21, %19, %22 : vector<64x64xi1>, vector<64x64xf32>
    %cst_17 = arith.constant dense<0xFF800000> : vector<64xf32>
    %24 = vector.multi_reduction <maximumf>, %23, %cst_17 [1] : vector<64x64xf32> to vector<64xf32>
    %25 = vector.shape_cast %24 : vector<64xf32> to vector<64x1xf32>
    %26 = vector.broadcast %25 : vector<64x1xf32> to vector<64x64xf32>
    %27 = arith.subf %23, %26 : vector<64x64xf32>
    %28 = math.exp %27 : vector<64x64xf32>
    %29 = arith.mulf %28, %1 : vector<64x64xf32>
    %cst_18 = arith.constant dense<0.000000e+00> : vector<64xf32>
    %30 = vector.multi_reduction <add>, %29, %cst_18 [1] : vector<64x64xf32> to vector<64xf32>
    %31 = vector.shape_cast %30 : vector<64xf32> to vector<64x1xf32>
    %32 = vector.broadcast %31 : vector<64x1xf32> to vector<64x64xf32>
    %33 = arith.divf %29, %32 : vector<64x64xf32>
    %cst_19 = arith.constant dense<0.000000e+00> : vector<64x200xf32>
    %34 = tpu.matmul %33, %4, %cst_19 {dimension_numbers = #tpu.dot_dimension_numbers<[1], [0], [0], [1], [0, 0, 1, 1], [], []>} : vector<64x64xf32>, vector<64x200xf32>, vector<64x200xf32> -> vector<64x200xf32>
    %c0_20 = arith.constant 0 : index
    %c0_21 = arith.constant 0 : index
    %35 = vector.load %arg7[%c0_20, %c0_21] : memref<1x200xf32, #tpu.memory_space<vmem>>, vector<1x200xf32>
    %36 = vector.broadcast %35 : vector<1x200xf32> to vector<64x200xf32>
    %37 = arith.addf %34, %36 : vector<64x200xf32>
    %cst_22 = arith.constant 0.000000e+00 : f32
    %38 = vector.broadcast %cst_22 : f32 to vector<64x200xf32>
    %39 = arith.maximumf %37, %38 : vector<64x200xf32>
    %c0_23 = arith.constant 0 : index
    %c0_24 = arith.constant 0 : index
    %c0_25 = arith.constant 0 : index
    %40 = vector.load %arg3[%c0_23, %c0_24, %c0_25] : memref<3x64x200xf32, #tpu.memory_space<vmem>>, vector<1x64x200xf32>
    %41 = vector.shape_cast %40 : vector<1x64x200xf32> to vector<64x200xf32>
    %42 = arith.mulf %39, %41 : vector<64x200xf32>
    %c0_26 = arith.constant 0 : index
    %c0_27 = arith.constant 0 : index
    %43 = vector.load %arg8[%c0_26, %c0_27] : memref<200x200xf32, #tpu.memory_space<vmem>>, vector<200x200xf32>
    %cst_28 = arith.constant dense<0.000000e+00> : vector<64x200xf32>
    %44 = tpu.matmul %42, %43, %cst_28 {dimension_numbers = #tpu.dot_dimension_numbers<[1], [0], [0], [1], [0, 0, 1, 1], [], []>} : vector<64x200xf32>, vector<200x200xf32>, vector<64x200xf32> -> vector<64x200xf32>
    %c0_29 = arith.constant 0 : index
    %c0_30 = arith.constant 0 : index
    %45 = vector.load %arg10[%c0_29, %c0_30] : memref<1x200xf32, #tpu.memory_space<vmem>>, vector<1x200xf32>
    %46 = vector.broadcast %45 : vector<1x200xf32> to vector<64x200xf32>
    %47 = arith.mulf %44, %46 : vector<64x200xf32>
    %cst_31 = arith.constant dense<0.000000e+00> : vector<64xf32>
    %48 = vector.multi_reduction <add>, %47, %cst_31 [1] : vector<64x200xf32> to vector<64xf32>
    %49 = vector.shape_cast %48 : vector<64xf32> to vector<64x1xf32>
    %c0_32 = arith.constant 0 : index
    %c0_33 = arith.constant 0 : index
    %50 = vector.load %arg9[%c0_32, %c0_33] : memref<1x200xf32, #tpu.memory_space<vmem>>, vector<1x200xf32>
    %cst_34 = arith.constant dense<0.000000e+00> : vector<1x64xf32>
    %51 = tpu.matmul %50, %44, %cst_34 {dimension_numbers = #tpu.dot_dimension_numbers<[1], [1], [0], [0], [0, 0, 1, 0], [], []>} : vector<1x200xf32>, vector<64x200xf32>, vector<1x64xf32> -> vector<1x64xf32>
    %52 = vector.broadcast %49 : vector<64x1xf32> to vector<64x64xf32>
    %53 = vector.broadcast %51 : vector<1x64xf32> to vector<64x64xf32>
    %54 = arith.addf %52, %53 : vector<64x64xf32>
    %cst_35 = arith.constant 0.000000e+00 : f32
    %55 = vector.broadcast %cst_35 : f32 to vector<64x64xf32>
    %56 = arith.cmpf oge, %54, %55 : vector<64x64xf32>
    %cst_36 = arith.constant 2.000000e-01 : f32
    %57 = vector.broadcast %cst_36 : f32 to vector<64x64xf32>
    %58 = arith.mulf %57, %54 : vector<64x64xf32>
    %59 = arith.select %56, %54, %58 : vector<64x64xi1>, vector<64x64xf32>
    %cst_37 = arith.constant 5.000000e-01 : f32
    %60 = vector.broadcast %cst_37 : f32 to vector<64x64xf32>
    %61 = arith.cmpf ogt, %1, %60 : vector<64x64xf32>
    %cst_38 = arith.constant -1.000000e+30 : f32
    %62 = vector.broadcast %cst_38 : f32 to vector<64x64xf32>
    %63 = arith.select %61, %59, %62 : vector<64x64xi1>, vector<64x64xf32>
    %cst_39 = arith.constant dense<0xFF800000> : vector<64xf32>
    %64 = vector.multi_reduction <maximumf>, %63, %cst_39 [1] : vector<64x64xf32> to vector<64xf32>
    %65 = vector.shape_cast %64 : vector<64xf32> to vector<64x1xf32>
    %66 = vector.broadcast %65 : vector<64x1xf32> to vector<64x64xf32>
    %67 = arith.subf %63, %66 : vector<64x64xf32>
    %68 = math.exp %67 : vector<64x64xf32>
    %69 = arith.mulf %68, %1 : vector<64x64xf32>
    %cst_40 = arith.constant dense<0.000000e+00> : vector<64xf32>
    %70 = vector.multi_reduction <add>, %69, %cst_40 [1] : vector<64x64xf32> to vector<64xf32>
    %71 = vector.shape_cast %70 : vector<64xf32> to vector<64x1xf32>
    %72 = vector.broadcast %71 : vector<64x1xf32> to vector<64x64xf32>
    %73 = arith.divf %69, %72 : vector<64x64xf32>
    %cst_41 = arith.constant dense<0.000000e+00> : vector<64x200xf32>
    %74 = tpu.matmul %73, %44, %cst_41 {dimension_numbers = #tpu.dot_dimension_numbers<[1], [0], [0], [1], [0, 0, 1, 1], [], []>} : vector<64x64xf32>, vector<64x200xf32>, vector<64x200xf32> -> vector<64x200xf32>
    %c0_42 = arith.constant 0 : index
    %c0_43 = arith.constant 0 : index
    %75 = vector.load %arg11[%c0_42, %c0_43] : memref<1x200xf32, #tpu.memory_space<vmem>>, vector<1x200xf32>
    %76 = vector.broadcast %75 : vector<1x200xf32> to vector<64x200xf32>
    %77 = arith.addf %74, %76 : vector<64x200xf32>
    %cst_44 = arith.constant 0.000000e+00 : f32
    %78 = vector.broadcast %cst_44 : f32 to vector<64x200xf32>
    %79 = arith.maximumf %77, %78 : vector<64x200xf32>
    %c1 = arith.constant 1 : index
    %c0_45 = arith.constant 0 : index
    %c0_46 = arith.constant 0 : index
    %80 = vector.load %arg3[%c1, %c0_45, %c0_46] : memref<3x64x200xf32, #tpu.memory_space<vmem>>, vector<1x64x200xf32>
    %81 = vector.shape_cast %80 : vector<1x64x200xf32> to vector<64x200xf32>
    %82 = arith.mulf %79, %81 : vector<64x200xf32>
    %c0_47 = arith.constant 0 : index
    %c0_48 = arith.constant 0 : index
    %83 = vector.load %arg12[%c0_47, %c0_48] : memref<200x200xf32, #tpu.memory_space<vmem>>, vector<200x200xf32>
    %cst_49 = arith.constant dense<0.000000e+00> : vector<64x200xf32>
    %84 = tpu.matmul %82, %83, %cst_49 {dimension_numbers = #tpu.dot_dimension_numbers<[1], [0], [0], [1], [0, 0, 1, 1], [], []>} : vector<64x200xf32>, vector<200x200xf32>, vector<64x200xf32> -> vector<64x200xf32>
    %c0_50 = arith.constant 0 : index
    %c0_51 = arith.constant 0 : index
    %85 = vector.load %arg14[%c0_50, %c0_51] : memref<1x200xf32, #tpu.memory_space<vmem>>, vector<1x200xf32>
    %86 = vector.broadcast %85 : vector<1x200xf32> to vector<64x200xf32>
    %87 = arith.mulf %84, %86 : vector<64x200xf32>
    %cst_52 = arith.constant dense<0.000000e+00> : vector<64xf32>
    %88 = vector.multi_reduction <add>, %87, %cst_52 [1] : vector<64x200xf32> to vector<64xf32>
    %89 = vector.shape_cast %88 : vector<64xf32> to vector<64x1xf32>
    %c0_53 = arith.constant 0 : index
    %c0_54 = arith.constant 0 : index
    %90 = vector.load %arg13[%c0_53, %c0_54] : memref<1x200xf32, #tpu.memory_space<vmem>>, vector<1x200xf32>
    %cst_55 = arith.constant dense<0.000000e+00> : vector<1x64xf32>
    %91 = tpu.matmul %90, %84, %cst_55 {dimension_numbers = #tpu.dot_dimension_numbers<[1], [1], [0], [0], [0, 0, 1, 0], [], []>} : vector<1x200xf32>, vector<64x200xf32>, vector<1x64xf32> -> vector<1x64xf32>
    %92 = vector.broadcast %89 : vector<64x1xf32> to vector<64x64xf32>
    %93 = vector.broadcast %91 : vector<1x64xf32> to vector<64x64xf32>
    %94 = arith.addf %92, %93 : vector<64x64xf32>
    %cst_56 = arith.constant 0.000000e+00 : f32
    %95 = vector.broadcast %cst_56 : f32 to vector<64x64xf32>
    %96 = arith.cmpf oge, %94, %95 : vector<64x64xf32>
    %cst_57 = arith.constant 2.000000e-01 : f32
    %97 = vector.broadcast %cst_57 : f32 to vector<64x64xf32>
    %98 = arith.mulf %97, %94 : vector<64x64xf32>
    %99 = arith.select %96, %94, %98 : vector<64x64xi1>, vector<64x64xf32>
    %cst_58 = arith.constant 5.000000e-01 : f32
    %100 = vector.broadcast %cst_58 : f32 to vector<64x64xf32>
    %101 = arith.cmpf ogt, %1, %100 : vector<64x64xf32>
    %cst_59 = arith.constant -1.000000e+30 : f32
    %102 = vector.broadcast %cst_59 : f32 to vector<64x64xf32>
    %103 = arith.select %101, %99, %102 : vector<64x64xi1>, vector<64x64xf32>
    %cst_60 = arith.constant dense<0xFF800000> : vector<64xf32>
    %104 = vector.multi_reduction <maximumf>, %103, %cst_60 [1] : vector<64x64xf32> to vector<64xf32>
    %105 = vector.shape_cast %104 : vector<64xf32> to vector<64x1xf32>
    %106 = vector.broadcast %105 : vector<64x1xf32> to vector<64x64xf32>
    %107 = arith.subf %103, %106 : vector<64x64xf32>
    %108 = math.exp %107 : vector<64x64xf32>
    %109 = arith.mulf %108, %1 : vector<64x64xf32>
    %cst_61 = arith.constant dense<0.000000e+00> : vector<64xf32>
    %110 = vector.multi_reduction <add>, %109, %cst_61 [1] : vector<64x64xf32> to vector<64xf32>
    %111 = vector.shape_cast %110 : vector<64xf32> to vector<64x1xf32>
    %112 = vector.broadcast %111 : vector<64x1xf32> to vector<64x64xf32>
    %113 = arith.divf %109, %112 : vector<64x64xf32>
    %cst_62 = arith.constant dense<0.000000e+00> : vector<64x200xf32>
    %114 = tpu.matmul %113, %84, %cst_62 {dimension_numbers = #tpu.dot_dimension_numbers<[1], [0], [0], [1], [0, 0, 1, 1], [], []>} : vector<64x64xf32>, vector<64x200xf32>, vector<64x200xf32> -> vector<64x200xf32>
    %c0_63 = arith.constant 0 : index
    %c0_64 = arith.constant 0 : index
    %115 = vector.load %arg15[%c0_63, %c0_64] : memref<1x200xf32, #tpu.memory_space<vmem>>, vector<1x200xf32>
    %116 = vector.broadcast %115 : vector<1x200xf32> to vector<64x200xf32>
    %117 = arith.addf %114, %116 : vector<64x200xf32>
    %cst_65 = arith.constant 0.000000e+00 : f32
    %118 = vector.broadcast %cst_65 : f32 to vector<64x200xf32>
    %119 = arith.maximumf %117, %118 : vector<64x200xf32>
    %c2 = arith.constant 2 : index
    %c0_66 = arith.constant 0 : index
    %c0_67 = arith.constant 0 : index
    %120 = vector.load %arg3[%c2, %c0_66, %c0_67] : memref<3x64x200xf32, #tpu.memory_space<vmem>>, vector<1x64x200xf32>
    %121 = vector.shape_cast %120 : vector<1x64x200xf32> to vector<64x200xf32>
    %122 = arith.mulf %119, %121 : vector<64x200xf32>
    %c0_68 = arith.constant 0 : index
    %c0_69 = arith.constant 0 : index
    %123 = vector.load %arg19[%c0_68, %c0_69] : memref<64x200xf32, #tpu.memory_space<vmem>>, vector<64x200xf32>
    tpu.vector_store %arg19[%c0_68, %c0_69], %122 {strides = array<i32>} : memref<64x200xf32, #tpu.memory_space<vmem>>, vector<64x200xf32>,
    %cst_70 = arith.constant dense<0.000000e+00> : vector<64x200xf32>
    %124 = tpu.matmul %0, %122, %cst_70 {dimension_numbers = #tpu.dot_dimension_numbers<[1], [0], [0], [1], [0, 0, 1, 1], [], []>} : vector<64x64xf32>, vector<64x200xf32>, vector<64x200xf32> -> vector<64x200xf32>
    %c0_71 = arith.constant 0 : index
    %c0_72 = arith.constant 0 : index
    %125 = vector.load %arg16[%c0_71, %c0_72] : memref<1x200xf32, #tpu.memory_space<vmem>>, vector<1x200xf32>
    %126 = vector.broadcast %125 : vector<1x200xf32> to vector<64x200xf32>
    %127 = arith.mulf %124, %126 : vector<64x200xf32>
    %cst_73 = arith.constant dense<0.000000e+00> : vector<64xf32>
    %128 = vector.multi_reduction <add>, %127, %cst_73 [1] : vector<64x200xf32> to vector<64xf32>
    %129 = vector.shape_cast %128 : vector<64xf32> to vector<64x1xf32>
    %c0_74 = arith.constant 0 : index
    %c0_75 = arith.constant 0 : index
    %130 = vector.load %arg17[%c0_74, %c0_75] : memref<1x1xf32, #tpu.memory_space<vmem>>, vector<1x1xf32>
    %131 = vector.broadcast %130 : vector<1x1xf32> to vector<64x1xf32>
    %132 = arith.addf %129, %131 : vector<64x1xf32>
    %c0_76 = arith.constant 0 : index
    %c0_77 = arith.constant 0 : index
    %133 = vector.load %arg18[%c0_76, %c0_77] : memref<1x200xf32, #tpu.memory_space<vmem>>, vector<1x200xf32>
    %134 = vector.broadcast %133 : vector<1x200xf32> to vector<64x200xf32>
    %135 = arith.mulf %122, %134 : vector<64x200xf32>
    %cst_78 = arith.constant dense<0.000000e+00> : vector<64xf32>
    %136 = vector.multi_reduction <add>, %135, %cst_78 [1] : vector<64x200xf32> to vector<64xf32>
    %137 = vector.shape_cast %136 : vector<64xf32> to vector<64x1xf32>
    %138 = arith.addf %132, %137 : vector<64x1xf32>
    %c0_79 = arith.constant 0 : index
    %c0_80 = arith.constant 0 : index
    %139 = vector.load %arg20[%c0_79, %c0_80] : memref<64x1xf32, #tpu.memory_space<vmem>>, vector<64x1xf32>
    tpu.vector_store %arg20[%c0_79, %c0_80], %138 {strides = array<i32>} : memref<64x1xf32, #tpu.memory_space<vmem>>, vector<64x1xf32>,
    return
  }
}

</mosaic_0001>

<llo_original>
// kernel: tpu_custom_call.1
$region0: #{tpu_custom_call.1}
  #allocation0 [shape = 'u32[]', space=smem, size = 0x4, offset = 0x4, fixed_abs, tag = 'smem constant byte address 0x4 - core index']
  #allocation1 [shape = 'u32[72,128]{1,0:T(1,128)}', space=vmem, size = 0x9000, scoped, tag = 'internal scratch']
  #allocation2 [shape = 'f32[1,1]{1,0:T(1,128)S(1)}', space=vmem, size = 0x200, scoped, tag = 'scoped memory for tpu_custom_call.1']
  %s0 = inlined_call_operand.vmem [shape: f32[64,16], index: 0, kind: input, shape index: {}]
  %s1 = inlined_call_operand.vmem [shape: f32[64,64], index: 1, kind: input, shape index: {}]
  %s2 = inlined_call_operand.hbm [shape: f32[64,64], index: 2, kind: input, shape index: {}]
  %s3 = inlined_call_operand.hbm [shape: f32[3,64,200], index: 3, kind: input, shape index: {}]
  %s4 = inlined_call_operand.hbm [shape: f32[16,200], index: 4, kind: input, shape index: {}]
  %s5 = inlined_call_operand.vmem [shape: f32[1,200], index: 5, kind: input, shape index: {}]
  %s6 = inlined_call_operand.vmem [shape: f32[1,200], index: 6, kind: input, shape index: {}]
  %s7 = inlined_call_operand.vmem [shape: f32[1,200], index: 7, kind: input, shape index: {}]
  %s8 = inlined_call_operand.hbm [shape: f32[200,200], index: 8, kind: input, shape index: {}]
  %s9 = inlined_call_operand.vmem [shape: f32[1,200], index: 9, kind: input, shape index: {}]
  %s10 = inlined_call_operand.vmem [shape: f32[1,200], index: 10, kind: input, shape index: {}]
  %s11 = inlined_call_operand.vmem [shape: f32[1,200], index: 11, kind: input, shape index: {}]
  %s12 = inlined_call_operand.hbm [shape: f32[200,200], index: 12, kind: input, shape index: {}]
  %s13 = inlined_call_operand.vmem [shape: f32[1,200], index: 13, kind: input, shape index: {}]
  %s14 = inlined_call_operand.vmem [shape: f32[1,200], index: 14, kind: input, shape index: {}]
  %s15 = inlined_call_operand.vmem [shape: f32[1,200], index: 15, kind: input, shape index: {}]
  %s16 = inlined_call_operand.vmem [shape: f32[1,200], index: 16, kind: input, shape index: {}]
  %s17 = inlined_call_operand.<no memory space> [shape: f32[1,1], index: 17, kind: input, shape index: {}]
  %s18 = inlined_call_operand.vmem [shape: f32[1,200], index: 18, kind: input, shape index: {}]
  %s19 = inlined_call_operand.hbm [shape: f32[64,200], index: 19, kind: output, shape index: {0}]
  %s20 = inlined_call_operand.vmem [shape: f32[64,1], index: 20, kind: output, shape index: {1}]
  %21 = xla_tuple %s19, %s20
  %s22 = sld [smem:[#allocation0]]
  $region114: #{tpu_custom_call.1} parent=0
    _
  %s24 = ssub.s32 1, %s22
  %s25 = scalar_select 0, %s24, %s22
  %v26 = vstv %s17
  %27 = vst [vmem:[#allocation2] sm:$0x1] %v26
  $region1: #{tpu_custom_call.1} parent=0
    #allocation3 [shape = 'u8[32768]{0}', space=vmem, size = 0x8000, scoped, tag = 'input window, operand 2, single buffered']
    #allocation4 [shape = 's32[1]{0}', space=sflag, size = 0x4, scoped, tag = 'scoped memory for tpu_custom_call.1']
    #allocation5 [shape = 's32[1]{0}', space=sflag, size = 0x4, scoped, tag = 'scoped memory for tpu_custom_call.1']
    #allocation6 [shape = 'u8[196608]{0}', space=vmem, size = 0x30000, scoped, tag = 'input window, operand 3, single buffered']
    #allocation7 [shape = 's32[1]{0}', space=sflag, size = 0x4, scoped, tag = 'scoped memory for tpu_custom_call.1']
    #allocation8 [shape = 'u8[16384]{0}', space=vmem, size = 0x4000, scoped, tag = 'input window, operand 4, single buffered']
    #allocation9 [shape = 'u8[204800]{0}', space=vmem, size = 0x32000, scoped, tag = 'input window, operand 8, single buffered']
    #allocation10 [shape = 's32[1]{0}', space=sflag, size = 0x4, scoped, tag = 'scoped memory for tpu_custom_call.1']
    #allocation11 [shape = 'u8[204800]{0}', space=vmem, size = 0x32000, scoped, tag = 'input window, operand 12, single buffered']
    #allocation12 [shape = 'u8[65536]{0}', space=vmem, size = 0x10000, scoped, tag = 'output window, operand 0, single buffered']
    %28 = vsyncpa [#allocation4], 0
    %29 = vsyncpa [#allocation7], 0
    %30 = vsyncpa [#allocation10], 0
    %31 = vsyncpa [#allocation5], 0
    // Predicated region
    $region2: #{tpu_custom_call.1} parent=1 // pred_check
      _
    $region3: #{tpu_custom_call.1} parent=1 // pred_check_branch
      %33 = sbr.rel (0) target = $region5
    $region4: #{tpu_custom_call.1} parent=1 // pred_region
      _
    $region5: #{tpu_custom_call.1} parent=1 // pred_fallthru
      _
    // Predicated region
    $region6: #{tpu_custom_call.1} parent=1 // pred_check
      _
    $region7: #{tpu_custom_call.1} parent=1 // pred_check_branch
      %35 = sbr.rel (0) target = $region9
    $region8: #{tpu_custom_call.1} parent=1 // pred_region
      _
    $region9: #{tpu_custom_call.1} parent=1 // pred_fallthru
      _
    // Predicated region
    $region10: #{tpu_custom_call.1} parent=1 // pred_check
      _
    $region11: #{tpu_custom_call.1} parent=1 // pred_check_branch
      %37 = sbr.rel (0) target = $region13
    $region12: #{tpu_custom_call.1} parent=1 // pred_region
      %39 = vsyncadd [#allocation4], 0
      %s40 = sshll.u32 %s2, 4
      %s41 = int_to_ptr.hbm [resolvable:$true] %s40
      %s42 = sshll.u32 [#allocation3], 4
      %s43 = int_to_ptr.vmem [resolvable:$true] %s42
      %48 = dma.hbm_to_vmem [thread:$0]  %s41, 1024, %s43, [#allocation4], 128, 128, 8
    $region13: #{tpu_custom_call.1} parent=1 // pred_fallthru
      _
    // Predicated region
    $region14: #{tpu_custom_call.1} parent=1 // pred_check
      _
    $region15: #{tpu_custom_call.1} parent=1 // pred_check_branch
      %50 = sbr.rel (0) target = $region17
    $region16: #{tpu_custom_call.1} parent=1 // pred_region
      %52 = vsyncadd [#allocation7], 0
      %s53 = sshll.u32 %s3, 4
      %s54 = int_to_ptr.hbm [resolvable:$true] %s53
      %s55 = sshll.u32 [#allocation6], 4
      %s56 = int_to_ptr.vmem [resolvable:$true] %s55
      %61 = dma.hbm_to_vmem [thread:$0]  %s54, 6144, %s56, [#allocation7], 256, 256, 16
    $region17: #{tpu_custom_call.1} parent=1 // pred_fallthru
      _
    // Predicated region
    $region18: #{tpu_custom_call.1} parent=1 // pred_check
      _
    $region19: #{tpu_custom_call.1} parent=1 // pred_check_branch
      %63 = sbr.rel (0) target = $region21
    $region20: #{tpu_custom_call.1} parent=1 // pred_region
      %65 = vsyncadd [#allocation7], 0
      %s66 = sshll.u32 %s4, 4
      %s67 = int_to_ptr.hbm [resolvable:$true] %s66
      %s68 = sshll.u32 [#allocation8], 4
      %s69 = int_to_ptr.vmem [resolvable:$true] %s68
      %74 = dma.hbm_to_vmem [thread:$0]  %s67, 512, %s69, [#allocation7], 256, 256, 16
    $region21: #{tpu_custom_call.1} parent=1 // pred_fallthru
      _
    // Predicated region
    $region22: #{tpu_custom_call.1} parent=1 // pred_check
      _
    $region23: #{tpu_custom_call.1} parent=1 // pred_check_branch
      %76 = sbr.rel (0) target = $region25
    $region24: #{tpu_custom_call.1} parent=1 // pred_region
      _
    $region25: #{tpu_custom_call.1} parent=1 // pred_fallthru
      _
    // Predicated region
    $region26: #{tpu_custom_call.1} parent=1 // pred_check
      _
    $region27: #{tpu_custom_call.1} parent=1 // pred_check_branch
      %78 = sbr.rel (0) target = $region29
    $region28: #{tpu_custom_call.1} parent=1 // pred_region
      _
    $region29: #{tpu_custom_call.1} parent=1 // pred_fallthru
      _
    // Predicated region
    $region30: #{tpu_custom_call.1} parent=1 // pred_check
      _
    $region31: #{tpu_custom_call.1} parent=1 // pred_check_branch
      %80 = sbr.rel (0) target = $region33
    $region32: #{tpu_custom_call.1} parent=1 // pred_region
      _
    $region33: #{tpu_custom_call.1} parent=1 // pred_fallthru
      _
    // Predicated region
    $region34: #{tpu_custom_call.1} parent=1 // pred_check
      _
    $region35: #{tpu_custom_call.1} parent=1 // pred_check_branch
      %82 = sbr.rel (0) target = $region37
    $region36: #{tpu_custom_call.1} parent=1 // pred_region
      %84 = vsyncadd [#allocation10], 0
      %s85 = sshll.u32 %s8, 4
      %s86 = int_to_ptr.hbm [resolvable:$true] %s85
      %s87 = sshll.u32 [#allocation9], 4
      %s88 = int_to_ptr.vmem [resolvable:$true] %s87
      %93 = dma.hbm_to_vmem [thread:$0]  %s86, 6400, %s88, [#allocation10], 256, 256, 16
    $region37: #{tpu_custom_call.1} parent=1 // pred_fallthru
      _
    // Predicated region
    $region38: #{tpu_custom_call.1} parent=1 // pred_check
      _
    $region39: #{tpu_custom_call.1} parent=1 // pred_check_branch
      %95 = sbr.rel (0) target = $region41
    $region40: #{tpu_custom_call.1} parent=1 // pred_region
      _
    $region41: #{tpu_custom_call.1} parent=1 // pred_fallthru
      _
    // Predicated region
    $region42: #{tpu_custom_call.1} parent=1 // pred_check
      _
    $region43: #{tpu_custom_call.1} parent=1 // pred_check_branch
      %97 = sbr.rel (0) target = $region45
    $region44: #{tpu_custom_call.1} parent=1 // pred_region
      _
    $region45: #{tpu_custom_call.1} parent=1 // pred_fallthru
      _
    // Predicated region
    $region46: #{tpu_custom_call.1} parent=1 // pred_check
      _
    $region47: #{tpu_custom_call.1} parent=1 // pred_check_branch
      %99 = sbr.rel (0) target = $region49
    $region48: #{tpu_custom_call.1} parent=1 // pred_region
      _
    $region49: #{tpu_custom_call.1} parent=1 // pred_fallthru
      _
    // Predicated region
    $region50: #{tpu_custom_call.1} parent=1 // pred_check
      _
    $region51: #{tpu_custom_call.1} parent=1 // pred_check_branch
      %101 = sbr.rel (0) target = $region53
    $region52: #{tpu_custom_call.1} parent=1 // pred_region
      %103 = vsyncadd [#allocation10], 0
      %s104 = sshll.u32 %s12, 4
      %s105 = int_to_ptr.hbm [resolvable:$true] %s104
      %s106 = sshll.u32 [#allocation11], 4
      %s107 = int_to_ptr.vmem [resolvable:$true] %s106
      %112 = dma.hbm_to_vmem [thread:$0]  %s105, 6400, %s107, [#allocation10], 256, 256, 16
    $region53: #{tpu_custom_call.1} parent=1 // pred_fallthru
      _
    // Predicated region
    $region54: #{tpu_custom_call.1} parent=1 // pred_check
      _
    $region55: #{tpu_custom_call.1} parent=1 // pred_check_branch
      %114 = sbr.rel (0) target = $region57
    $region56: #{tpu_custom_call.1} parent=1 // pred_region
      _
    $region57: #{tpu_custom_call.1} parent=1 // pred_fallthru
      _
    // Predicated region
    $region58: #{tpu_custom_call.1} parent=1 // pred_check
      _
    $region59: #{tpu_custom_call.1} parent=1 // pred_check_branch
      %116 = sbr.rel (0) target = $region61
    $region60: #{tpu_custom_call.1} parent=1 // pred_region
      _
    $region61: #{tpu_custom_call.1} parent=1 // pred_fallthru
      _
    // Predicated region
    $region62: #{tpu_custom_call.1} parent=1 // pred_check
      _
    $region63: #{tpu_custom_call.1} parent=1 // pred_check_branch
      %118 = sbr.rel (0) target = $region65
    $region64: #{tpu_custom_call.1} parent=1 // pred_region
      _
    $region65: #{tpu_custom_call.1} parent=1 // pred_fallthru
      _
    // Predicated region
    $region66: #{tpu_custom_call.1} parent=1 // pred_check
      _
    $region67: #{tpu_custom_call.1} parent=1 // pred_check_branch
      %120 = sbr.rel (0) target = $region69
    $region68: #{tpu_custom_call.1} parent=1 // pred_region
      _
    $region69: #{tpu_custom_call.1} parent=1 // pred_fallthru
      _
    // Predicated region
    $region70: #{tpu_custom_call.1} parent=1 // pred_check
      _
    $region71: #{tpu_custom_call.1} parent=1 // pred_check_branch
      %122 = sbr.rel (0) target = $region73
    $region72: #{tpu_custom_call.1} parent=1 // pred_region
      _
    $region73: #{tpu_custom_call.1} parent=1 // pred_fallthru
      _
    // Predicated region
    $region74: #{tpu_custom_call.1} parent=1 // pred_check
      _
    $region75: #{tpu_custom_call.1} parent=1 // pred_check_branch
      %124 = sbr.rel (0) target = $region77
    $region76: #{tpu_custom_call.1} parent=1 // pred_region
      _
    $region77: #{tpu_custom_call.1} parent=1 // pred_fallthru
      _
    // Predicated region
    $region78: #{tpu_custom_call.1} parent=1 // pred_check
      _
    $region79: #{tpu_custom_call.1} parent=1 // pred_check_branch
      %126 = sbr.rel (0) target = $region81
    $region80: #{tpu_custom_call.1} parent=1 // pred_region
      %128 = dma.done [#allocation4], 1024
    $region81: #{tpu_custom_call.1} parent=1 // pred_fallthru
      _
    // Predicated region
    $region82: #{tpu_custom_call.1} parent=1 // pred_check
      _
    $region83: #{tpu_custom_call.1} parent=1 // pred_check_branch
      %130 = sbr.rel (0) target = $region85
    $region84: #{tpu_custom_call.1} parent=1 // pred_region
      %132 = dma.done [#allocation7], 6144
    $region85: #{tpu_custom_call.1} parent=1 // pred_fallthru
      _
    // Predicated region
    $region86: #{tpu_custom_call.1} parent=1 // pred_check
      _
    $region87: #{tpu_custom_call.1} parent=1 // pred_check_branch
      %134 = sbr.rel (0) target = $region89
    $region88: #{tpu_custom_call.1} parent=1 // pred_region
      %136 = dma.done [#allocation7], 512
    $region89: #{tpu_custom_call.1} parent=1 // pred_fallthru
      _
    // Predicated region
    $region90: #{tpu_custom_call.1} parent=1 // pred_check
      _
    $region91: #{tpu_custom_call.1} parent=1 // pred_check_branch
      %138 = sbr.rel (0) target = $region93
    $region92: #{tpu_custom_call.1} parent=1 // pred_region
      %140 = dma.done [#allocation10], 6400
    $region93: #{tpu_custom_call.1} parent=1 // pred_fallthru
      _
    // Predicated region
    $region94: #{tpu_custom_call.1} parent=1 // pred_check
      _
    $region95: #{tpu_custom_call.1} parent=1 // pred_check_branch
      %142 = sbr.rel (0) target = $region97
    $region96: #{tpu_custom_call.1} parent=1 // pred_region
      %144 = dma.done [#allocation10], 6400
    $region97: #{tpu_custom_call.1} parent=1 // pred_fallthru
      _
    %v145 = vld [vmem:[%s1] sm:$0xff]
    %v146 = vld [vmem:[%s1 + $0x8] sm:$0xff]
    %v147 = vld [vmem:[%s1 + $0x10] sm:$0xff]
    %v148 = vld [vmem:[%s1 + $0x18] sm:$0xff]
    %v149 = vld [vmem:[%s1 + $0x20] sm:$0xff]
    %v150 = vld [vmem:[%s1 + $0x28] sm:$0xff]
    %v151 = vld [vmem:[%s1 + $0x30] sm:$0xff]
    %v152 = vld [vmem:[%s1 + $0x38] sm:$0xff]
    %v153 = vld [vmem:[#allocation3] sm:$0xff]
    %v154 = vld [vmem:[#allocation3 + $0x8] sm:$0xff]
    %v155 = vld [vmem:[#allocation3 + $0x10] sm:$0xff]
    %v156 = vld [vmem:[#allocation3 + $0x18] sm:$0xff]
    %v157 = vld [vmem:[#allocation3 + $0x20] sm:$0xff]
    %v158 = vld [vmem:[#allocation3 + $0x28] sm:$0xff]
    %v159 = vld [vmem:[#allocation3 + $0x30] sm:$0xff]
    %v160 = vld [vmem:[#allocation3 + $0x38] sm:$0xff]
    %v161 = vld [vmem:[%s0] sm:$0xff]
    %v162 = vld [vmem:[%s0 + $0x8] sm:$0xff]
    %v163 = vld [vmem:[%s0 + $0x10] sm:$0xff]
    %v164 = vld [vmem:[%s0 + $0x18] sm:$0xff]
    %v165 = vld [vmem:[%s0 + $0x20] sm:$0xff]
    %v166 = vld [vmem:[%s0 + $0x28] sm:$0xff]
    %v167 = vld [vmem:[%s0 + $0x30] sm:$0xff]
    %v168 = vld [vmem:[%s0 + $0x38] sm:$0xff]
    %v169 = vld [vmem:[#allocation8] sm:$0xff]
    %v170 = vld [vmem:[#allocation8 + $0x8] sm:$0xff]
    %v171 = vld [vmem:[#allocation8 + $0x10] sm:$0xff]
    %v172 = vld [vmem:[#allocation8 + $0x18] sm:$0xff]
    %vm173 = vcmask 130048
    %v175 = vsel %vm173, %v161, 0
    %v178 = vsel %vm173, %v162, 0
    %v181 = vsel %vm173, %v163, 0
    %v184 = vsel %vm173, %v164, 0
    %v187 = vsel %vm173, %v165, 0
    %v190 = vsel %vm173, %v166, 0
    %v193 = vsel %vm173, %v167, 0
    %v196 = vsel %vm173, %v168, 0
    %198 = vmatpush.msra.mxu0 0.0
    %199 = vmatpush.msra.mxu0 0.0
    %200 = vmatpush.msra.mxu0 0.0
    %201 = vmatpush.msra.mxu0 0.0
    %202 = vmatpush.msra.mxu0 0.0
    %203 = vmatpush.msra.mxu0 0.0
    %204 = vmatpush.msra.mxu0 0.0
    %205 = vmatpush.msra.mxu0 0.0
    %206 = vmatpush.msra.mxu0 0.0
    %207 = vmatpush.msra.mxu0 0.0
    %208 = vmatpush.msra.mxu0 0.0
    %209 = vmatpush.msra.mxu0 0.0
    %210 = vmatpush.msra.mxu0 0.0
    %211 = vmatpush.msra.mxu0 0.0
    %212 = vmatpush.msra.mxu0 %v171
    %213 = vmatpush.msra.mxu0 %v169
    %214 = vmatmul.f32.gmra.mxu0 %v175
    %v215 = vpop.f32.mrf.mxu0
    %v216 = vadd.f32 0.0, %v215
    %217 = vmatmul.f32.gmra.mxu0 %v178
    %v218 = vpop.f32.mrf.mxu0
    %v219 = vadd.f32 0.0, %v218
    %220 = vmatmul.f32.gmra.mxu0 %v181
    %v221 = vpop.f32.mrf.mxu0
    %v222 = vadd.f32 0.0, %v221
    %223 = vmatmul.f32.gmra.mxu0 %v184
    %v224 = vpop.f32.mrf.mxu0
    %v225 = vadd.f32 0.0, %v224
    %226 = vmatmul.f32.gmra.mxu0 %v187
    %v227 = vpop.f32.mrf.mxu0
    %v228 = vadd.f32 0.0, %v227
    %229 = vmatmul.f32.gmra.mxu0 %v190
    %v230 = vpop.f32.mrf.mxu0
    %v231 = vadd.f32 0.0, %v230
    %232 = vmatmul.f32.gmra.mxu0 %v193
    %v233 = vpop.f32.mrf.mxu0
    %v234 = vadd.f32 0.0, %v233
    %235 = vmatmul.f32.gmra.mxu0 %v196
    %v236 = vpop.f32.mrf.mxu0
    %v237 = vadd.f32 0.0, %v236
    %238 = vdwg.mxu0
    %239 = vmatpush.msra.mxu0 0.0
    %240 = vmatpush.msra.mxu0 0.0
    %241 = vmatpush.msra.mxu0 0.0
    %242 = vmatpush.msra.mxu0 0.0
    %243 = vmatpush.msra.mxu0 0.0
    %244 = vmatpush.msra.mxu0 0.0
    %245 = vmatpush.msra.mxu0 0.0
    %246 = vmatpush.msra.mxu0 0.0
    %247 = vmatpush.msra.mxu0 0.0
    %248 = vmatpush.msra.mxu0 0.0
    %249 = vmatpush.msra.mxu0 0.0
    %250 = vmatpush.msra.mxu0 0.0
    %251 = vmatpush.msra.mxu0 0.0
    %252 = vmatpush.msra.mxu0 0.0
    %253 = vmatpush.msra.mxu0 %v172
    %254 = vmatpush.msra.mxu0 %v170
    %255 = vmatmul.f32.gmra.mxu0 %v175
    %v256 = vpop.f32.mrf.mxu0
    %v257 = vadd.f32 0.0, %v256
    %258 = vmatmul.f32.gmra.mxu0 %v178
    %v259 = vpop.f32.mrf.mxu0
    %v260 = vadd.f32 0.0, %v259
    %261 = vmatmul.f32.gmra.mxu0 %v181
    %v262 = vpop.f32.mrf.mxu0
    %v263 = vadd.f32 0.0, %v262
    %264 = vmatmul.f32.gmra.mxu0 %v184
    %v265 = vpop.f32.mrf.mxu0
    %v266 = vadd.f32 0.0, %v265
    %267 = vmatmul.f32.gmra.mxu0 %v187
    %v268 = vpop.f32.mrf.mxu0
    %v269 = vadd.f32 0.0, %v268
    %270 = vmatmul.f32.gmra.mxu0 %v190
    %v271 = vpop.f32.mrf.mxu0
    %v272 = vadd.f32 0.0, %v271
    %273 = vmatmul.f32.gmra.mxu0 %v193
    %v274 = vpop.f32.mrf.mxu0
    %v275 = vadd.f32 0.0, %v274
    %276 = vmatmul.f32.gmra.mxu0 %v196
    %v277 = vpop.f32.mrf.mxu0
    %v278 = vadd.f32 0.0, %v277
    %279 = vdwg.mxu0
    %v280 = vld [vmem:[%s6] sm:$0x3]
    %v282 = vperm.slane %v280, 0
    %v283 = vperm.slane %v280, 1
    %v286 = vmul.f32 %v216, %v282
    %v287 = vmul.f32 %v257, %v283
    %v288 = vmul.f32 %v219, %v282
    %v289 = vmul.f32 %v260, %v283
    %v290 = vmul.f32 %v222, %v282
    %v291 = vmul.f32 %v263, %v283
    %v292 = vmul.f32 %v225, %v282
    %v293 = vmul.f32 %v266, %v283
    %v294 = vmul.f32 %v228, %v282
    %v295 = vmul.f32 %v269, %v283
    %v296 = vmul.f32 %v231, %v282
    %v297 = vmul.f32 %v272, %v283
    %v298 = vmul.f32 %v234, %v282
    %v299 = vmul.f32 %v275, %v283
    %v300 = vmul.f32 %v237, %v282
    %v301 = vmul.f32 %v278, %v283
    %vm302 = vcmask 588800
    %v303 = vsel %vm302, %v287, 0.0
    %v304 = vadd.f32 %v286, %v303
    %305 = vadd.xlane.f32.xlu0 %v304
    %v306 = vpop.xlane.xlu0 %305
    %v307 = vsel %vm302, %v289, 0.0
    %v308 = vadd.f32 %v288, %v307
    %309 = vadd.xlane.f32.xlu0 %v308
    %v310 = vpop.xlane.xlu0 %309
    %v311 = vsel %vm302, %v291, 0.0
    %v312 = vadd.f32 %v290, %v311
    %313 = vadd.xlane.f32.xlu0 %v312
    %v314 = vpop.xlane.xlu0 %313
    %v315 = vsel %vm302, %v293, 0.0
    %v316 = vadd.f32 %v292, %v315
    %317 = vadd.xlane.f32.xlu0 %v316
    %v318 = vpop.xlane.xlu0 %317
    %v319 = vsel %vm302, %v295, 0.0
    %v320 = vadd.f32 %v294, %v319
    %321 = vadd.xlane.f32.xlu0 %v320
    %v322 = vpop.xlane.xlu0 %321
    %v323 = vsel %vm302, %v297, 0.0
    %v324 = vadd.f32 %v296, %v323
    %325 = vadd.xlane.f32.xlu0 %v324
    %v326 = vpop.xlane.xlu0 %325
    %v327 = vsel %vm302, %v299, 0.0
    %v328 = vadd.f32 %v298, %v327
    %329 = vadd.xlane.f32.xlu0 %v328
    %v330 = vpop.xlane.xlu0 %329
    %v331 = vsel %vm302, %v301, 0.0
    %v332 = vadd.f32 %v300, %v331
    %333 = vadd.xlane.f32.xlu0 %v332
    %v334 = vpop.xlane.xlu0 %333
    %v335 = vld [vmem:[%s5] sm:$0x3]
    %v337 = vperm.slane %v335, 0
    %v338 = vperm.slane %v335, 1
    %v340 = vsel %vm302, %v338, 0
    %v343 = vsel %vm302, %v257, 0
    %v346 = vsel %vm302, %v260, 0
    %v349 = vsel %vm302, %v263, 0
    %v352 = vsel %vm302, %v266, 0
    %v355 = vsel %vm302, %v269, 0
    %v358 = vsel %vm302, %v272, 0
    %v361 = vsel %vm302, %v275, 0
    %v364 = vsel %vm302, %v278, 0
    %366 = vmatpush.xpose.msra.mxu0 0.0
    %367 = vmatpush.xpose.msra.mxu0 0.0
    %368 = vmatpush.xpose.msra.mxu0 0.0
    %369 = vmatpush.xpose.msra.mxu0 0.0
    %370 = vmatpush.xpose.msra.mxu0 0.0
    %371 = vmatpush.xpose.msra.mxu0 0.0
    %372 = vmatpush.xpose.msra.mxu0 0.0
    %373 = vmatpush.xpose.msra.mxu0 0.0
    %374 = vmatpush.xpose.msra.mxu0 %v237
    %375 = vmatpush.xpose.msra.mxu0 %v234
    %376 = vmatpush.xpose.msra.mxu0 %v231
    %377 = vmatpush.xpose.msra.mxu0 %v228
    %378 = vmatpush.xpose.msra.mxu0 %v225
    %379 = vmatpush.xpose.msra.mxu0 %v222
    %380 = vmatpush.xpose.msra.mxu0 %v219
    %381 = vmatpush.xpose.msra.mxu0 %v216
    %382 = vmatmul.f32.gmra.mxu0 %v337
    %v383 = vpop.f32.mrf.mxu0
    %v384 = vadd.f32 0.0, %v383
    %385 = vdwg.mxu0
    %386 = vmatpush.xpose.msra.mxu0 0.0
    %387 = vmatpush.xpose.msra.mxu0 0.0
    %388 = vmatpush.xpose.msra.mxu0 0.0
    %389 = vmatpush.xpose.msra.mxu0 0.0
    %390 = vmatpush.xpose.msra.mxu0 0.0
    %391 = vmatpush.xpose.msra.mxu0 0.0
    %392 = vmatpush.xpose.msra.mxu0 0.0
    %393 = vmatpush.xpose.msra.mxu0 0.0
    %394 = vmatpush.xpose.msra.mxu0 %v364
    %395 = vmatpush.xpose.msra.mxu0 %v361
    %396 = vmatpush.xpose.msra.mxu0 %v358
    %397 = vmatpush.xpose.msra.mxu0 %v355
    %398 = vmatpush.xpose.msra.mxu0 %v352
    %399 = vmatpush.xpose.msra.mxu0 %v349
    %400 = vmatpush.xpose.msra.mxu0 %v346
    %401 = vmatpush.xpose.msra.mxu0 %v343
    %402 = vmatmul.f32.gmra.mxu0 %v340
    %v403 = vpop.f32.mrf.mxu0
    %v404 = vadd.f32 %v384, %v403
    %405 = vdwg.mxu0
    %v406 = vperm.slane %v404, 0
    %v407 = vadd.f32 %v306, %v406
    %v408 = vadd.f32 %v310, %v406
    %v409 = vadd.f32 %v314, %v406
    %v410 = vadd.f32 %v318, %v406
    %v411 = vadd.f32 %v322, %v406
    %v412 = vadd.f32 %v326, %v406
    %v413 = vadd.f32 %v330, %v406
    %v414 = vadd.f32 %v334, %v406
    %vm415 = vcmp.ge.f32.partialorder %v407, 0.0
    %vm416 = vcmp.ge.f32.partialorder %v408, 0.0
    %vm417 = vcmp.ge.f32.partialorder %v409, 0.0
    %vm418 = vcmp.ge.f32.partialorder %v410, 0.0
    %vm419 = vcmp.ge.f32.partialorder %v411, 0.0
    %vm420 = vcmp.ge.f32.partialorder %v412, 0.0
    %vm421 = vcmp.ge.f32.partialorder %v413, 0.0
    %vm422 = vcmp.ge.f32.partialorder %v414, 0.0
    %v423 = vmul.f32 %v407, 0.2
    %v424 = vmul.f32 %v408, 0.2
    %v425 = vmul.f32 %v409, 0.2
    %v426 = vmul.f32 %v410, 0.2
    %v427 = vmul.f32 %v411, 0.2
    %v428 = vmul.f32 %v412, 0.2
    %v429 = vmul.f32 %v413, 0.2
    %v430 = vmul.f32 %v414, 0.2
    %v431 = vsel %vm415, %v407, %v423
    %v432 = vsel %vm416, %v408, %v424
    %v433 = vsel %vm417, %v409, %v425
    %v434 = vsel %vm418, %v410, %v426
    %v435 = vsel %vm419, %v411, %v427
    %v436 = vsel %vm420, %v412, %v428
    %v437 = vsel %vm421, %v413, %v429
    %v438 = vsel %vm422, %v414, %v430
    %vm439 = vcmp.gt.f32.partialorder %v153, 0.5
    %vm440 = vcmp.gt.f32.partialorder %v154, 0.5
    %vm441 = vcmp.gt.f32.partialorder %v155, 0.5
    %vm442 = vcmp.gt.f32.partialorder %v156, 0.5
    %vm443 = vcmp.gt.f32.partialorder %v157, 0.5
    %vm444 = vcmp.gt.f32.partialorder %v158, 0.5
    %vm445 = vcmp.gt.f32.partialorder %v159, 0.5
    %vm446 = vcmp.gt.f32.partialorder %v160, 0.5
    %v447 = vsel %vm439, %v431, -1e+30
    %v448 = vsel %vm440, %v432, -1e+30
    %v449 = vsel %vm441, %v433, -1e+30
    %v450 = vsel %vm442, %v434, -1e+30
    %v451 = vsel %vm443, %v435, -1e+30
    %v452 = vsel %vm444, %v436, -1e+30
    %v453 = vsel %vm445, %v437, -1e+30
    %v454 = vsel %vm446, %v438, -1e+30
    %vm455 = vcmask 523264
    %v456 = vsel %vm455, %v447, -inf
    %457 = vmax.xlane.f32.xlu0 %v456
    %v458 = vpop.xlane.xlu0 %457
    %v459 = vsel %vm455, %v448, -inf
    %460 = vmax.xlane.f32.xlu0 %v459
    %v461 = vpop.xlane.xlu0 %460
    %v462 = vsel %vm455, %v449, -inf
    %463 = vmax.xlane.f32.xlu0 %v462
    %v464 = vpop.xlane.xlu0 %463
    %v465 = vsel %vm455, %v450, -inf
    %466 = vmax.xlane.f32.xlu0 %v465
    %v467 = vpop.xlane.xlu0 %466
    %v468 = vsel %vm455, %v451, -inf
    %469 = vmax.xlane.f32.xlu0 %v468
    %v470 = vpop.xlane.xlu0 %469
    %v471 = vsel %vm455, %v452, -inf
    %472 = vmax.xlane.f32.xlu0 %v471
    %v473 = vpop.xlane.xlu0 %472
    %v474 = vsel %vm455, %v453, -inf
    %475 = vmax.xlane.f32.xlu0 %v474
    %v476 = vpop.xlane.xlu0 %475
    %v477 = vsel %vm455, %v454, -inf
    %478 = vmax.xlane.f32.xlu0 %v477
    %v479 = vpop.xlane.xlu0 %478
    %v480 = vsub.f32 %v447, %v458
    %v481 = vsub.f32 %v448, %v461
    %v482 = vsub.f32 %v449, %v464
    %v483 = vsub.f32 %v450, %v467
    %v484 = vsub.f32 %v451, %v470
    %v485 = vsub.f32 %v452, %v473
    %v486 = vsub.f32 %v453, %v476
    %v487 = vsub.f32 %v454, %v479
    %v488 = vmul.f32 %v480, 1.442695
    %v489 = vpow.pop %v488
    %v490 = vmul.f32 %v481, 1.442695
    %v491 = vpow.pop %v490
    %v492 = vmul.f32 %v482, 1.442695
    %v493 = vpow.pop %v492
    %v494 = vmul.f32 %v483, 1.442695
    %v495 = vpow.pop %v494
    %v496 = vmul.f32 %v484, 1.442695
    %v497 = vpow.pop %v496
    %v498 = vmul.f32 %v485, 1.442695
    %v499 = vpow.pop %v498
    %v500 = vmul.f32 %v486, 1.442695
    %v501 = vpow.pop %v500
    %v502 = vmul.f32 %v487, 1.442695
    %v503 = vpow.pop %v502
    %v504 = vmul.f32 %v489, %v153
    %v505 = vmul.f32 %v491, %v154
    %v506 = vmul.f32 %v493, %v155
    %v507 = vmul.f32 %v495, %v156
    %v508 = vmul.f32 %v497, %v157
    %v509 = vmul.f32 %v499, %v158
    %v510 = vmul.f32 %v501, %v159
    %v511 = vmul.f32 %v503, %v160
    %v512 = vsel %vm455, %v504, 0.0
    %513 = vadd.xlane.f32.xlu0 %v512
    %v514 = vpop.xlane.xlu0 %513
    %v515 = vsel %vm455, %v505, 0.0
    %516 = vadd.xlane.f32.xlu0 %v515
    %v517 = vpop.xlane.xlu0 %516
    %v518 = vsel %vm455, %v506, 0.0
    %519 = vadd.xlane.f32.xlu0 %v518
    %v520 = vpop.xlane.xlu0 %519
    %v521 = vsel %vm455, %v507, 0.0
    %522 = vadd.xlane.f32.xlu0 %v521
    %v523 = vpop.xlane.xlu0 %522
    %v524 = vsel %vm455, %v508, 0.0
    %525 = vadd.xlane.f32.xlu0 %v524
    %v526 = vpop.xlane.xlu0 %525
    %v527 = vsel %vm455, %v509, 0.0
    %528 = vadd.xlane.f32.xlu0 %v527
    %v529 = vpop.xlane.xlu0 %528
    %v530 = vsel %vm455, %v510, 0.0
    %531 = vadd.xlane.f32.xlu0 %v530
    %v532 = vpop.xlane.xlu0 %531
    %v533 = vsel %vm455, %v511, 0.0
    %534 = vadd.xlane.f32.xlu0 %v533
    %v535 = vpop.xlane.xlu0 %534
    %v536 = vrcp.pop %v514
    %v537 = vmul.f32 %v514, %v536
    %v538 = vsub.f32 1.0, %v537
    %v539 = vmul.f32 %v536, %v538
    %v540 = vadd.f32 %v536, %v539
    %vm541 = vweird.f32 %v514
    %vm542 = vweird.f32 %v536
    %vm543 = vmor %vm541, %vm542
    %v544 = vsel %vm543, %v536, %v540
    %v545 = vand.u32 2147483647, %v514
    %vm546 = vcmp.eq.f32.partialorder %v545, 8.507059e+37
    %v547 = vand.u32 %v514, 2147483648
    %v548 = vor.u32 1.1754944e-38, %v547
    %v549 = vsel %vm546, %v548, %v544
    %v550 = vmul.f32 %v504, %v549
    %v551 = vrcp.pop %v517
    %v552 = vmul.f32 %v517, %v551
    %v553 = vsub.f32 1.0, %v552
    %v554 = vmul.f32 %v551, %v553
    %v555 = vadd.f32 %v551, %v554
    %vm556 = vweird.f32 %v517
    %vm557 = vweird.f32 %v551
    %vm558 = vmor %vm556, %vm557
    %v559 = vsel %vm558, %v551, %v555
    %v560 = vand.u32 2147483647, %v517
    %vm561 = vcmp.eq.f32.partialorder %v560, 8.507059e+37
    %v562 = vand.u32 %v517, 2147483648
    %v563 = vor.u32 1.1754944e-38, %v562
    %v564 = vsel %vm561, %v563, %v559
    %v565 = vmul.f32 %v505, %v564
    %v566 = vrcp.pop %v520
    %v567 = vmul.f32 %v520, %v566
    %v568 = vsub.f32 1.0, %v567
    %v569 = vmul.f32 %v566, %v568
    %v570 = vadd.f32 %v566, %v569
    %vm571 = vweird.f32 %v520
    %vm572 = vweird.f32 %v566
    %vm573 = vmor %vm571, %vm572
    %v574 = vsel %vm573, %v566, %v570
    %v575 = vand.u32 2147483647, %v520
    %vm576 = vcmp.eq.f32.partialorder %v575, 8.507059e+37
    %v577 = vand.u32 %v520, 2147483648
    %v578 = vor.u32 1.1754944e-38, %v577
    %v579 = vsel %vm576, %v578, %v574
    %v580 = vmul.f32 %v506, %v579
    %v581 = vrcp.pop %v523
    %v582 = vmul.f32 %v523, %v581
    %v583 = vsub.f32 1.0, %v582
    %v584 = vmul.f32 %v581, %v583
    %v585 = vadd.f32 %v581, %v584
    %vm586 = vweird.f32 %v523
    %vm587 = vweird.f32 %v581
    %vm588 = vmor %vm586, %vm587
    %v589 = vsel %vm588, %v581, %v585
    %v590 = vand.u32 2147483647, %v523
    %vm591 = vcmp.eq.f32.partialorder %v590, 8.507059e+37
    %v592 = vand.u32 %v523, 2147483648
    %v593 = vor.u32 1.1754944e-38, %v592
    %v594 = vsel %vm591, %v593, %v589
    %v595 = vmul.f32 %v507, %v594
    %v596 = vrcp.pop %v526
    %v597 = vmul.f32 %v526, %v596
    %v598 = vsub.f32 1.0, %v597
    %v599 = vmul.f32 %v596, %v598
    %v600 = vadd.f32 %v596, %v599
    %vm601 = vweird.f32 %v526
    %vm602 = vweird.f32 %v596
    %vm603 = vmor %vm601, %vm602
    %v604 = vsel %vm603, %v596, %v600
    %v605 = vand.u32 2147483647, %v526
    %vm606 = vcmp.eq.f32.partialorder %v605, 8.507059e+37
    %v607 = vand.u32 %v526, 2147483648
    %v608 = vor.u32 1.1754944e-38, %v607
    %v609 = vsel %vm606, %v608, %v604
    %v610 = vmul.f32 %v508, %v609
    %v611 = vrcp.pop %v529
    %v612 = vmul.f32 %v529, %v611
    %v613 = vsub.f32 1.0, %v612
    %v614 = vmul.f32 %v611, %v613
    %v615 = vadd.f32 %v611, %v614
    %vm616 = vweird.f32 %v529
    %vm617 = vweird.f32 %v611
    %vm618 = vmor %vm616, %vm617
    %v619 = vsel %vm618, %v611, %v615
    %v620 = vand.u32 2147483647, %v529
    %vm621 = vcmp.eq.f32.partialorder %v620, 8.507059e+37
    %v622 = vand.u32 %v529, 2147483648
    %v623 = vor.u32 1.1754944e-38, %v622
    %v624 = vsel %vm621, %v623, %v619
    %v625 = vmul.f32 %v509, %v624
    %v626 = vrcp.pop %v532
    %v627 = vmul.f32 %v532, %v626
    %v628 = vsub.f32 1.0, %v627
    %v629 = vmul.f32 %v626, %v628
    %v630 = vadd.f32 %v626, %v629
    %vm631 = vweird.f32 %v532
    %vm632 = vweird.f32 %v626
    %vm633 = vmor %vm631, %vm632
    %v634 = vsel %vm633, %v626, %v630
    %v635 = vand.u32 2147483647, %v532
    %vm636 = vcmp.eq.f32.partialorder %v635, 8.507059e+37
    %v637 = vand.u32 %v532, 2147483648
    %v638 = vor.u32 1.1754944e-38, %v637
    %v639 = vsel %vm636, %v638, %v634
    %v640 = vmul.f32 %v510, %v639
    %v641 = vrcp.pop %v535
    %v642 = vmul.f32 %v535, %v641
    %v643 = vsub.f32 1.0, %v642
    %v644 = vmul.f32 %v641, %v643
    %v645 = vadd.f32 %v641, %v644
    %vm646 = vweird.f32 %v535
    %vm647 = vweird.f32 %v641
    %vm648 = vmor %vm646, %vm647
    %v649 = vsel %vm648, %v641, %v645
    %v650 = vand.u32 2147483647, %v535
    %vm651 = vcmp.eq.f32.partialorder %v650, 8.507059e+37
    %v652 = vand.u32 %v535, 2147483648
    %v653 = vor.u32 1.1754944e-38, %v652
    %v654 = vsel %vm651, %v653, %v649
    %v655 = vmul.f32 %v511, %v654
    %v656 = vld [vmem:[%s7] sm:$0x3]
    %v658 = vperm.slane %v656, 0
    %v659 = vperm.slane %v656, 1
    %v663 = vsel %vm455, %v550, 0
    %v666 = vsel %vm455, %v565, 0
    %v669 = vsel %vm455, %v580, 0
    %v672 = vsel %vm455, %v595, 0
    %v675 = vsel %vm455, %v610, 0
    %v678 = vsel %vm455, %v625, 0
    %v681 = vsel %vm455, %v640, 0
    %v684 = vsel %vm455, %v655, 0
    %686 = vmatpush.msra.mxu0 0.0
    %687 = vmatpush.msra.mxu0 0.0
    %688 = vmatpush.msra.mxu0 0.0
    %689 = vmatpush.msra.mxu0 0.0
    %690 = vmatpush.msra.mxu0 0.0
    %691 = vmatpush.msra.mxu0 0.0
    %692 = vmatpush.msra.mxu0 0.0
    %693 = vmatpush.msra.mxu0 0.0
    %694 = vmatpush.msra.mxu0 %v237
    %695 = vmatpush.msra.mxu0 %v234
    %696 = vmatpush.msra.mxu0 %v231
    %697 = vmatpush.msra.mxu0 %v228
    %698 = vmatpush.msra.mxu0 %v225
    %699 = vmatpush.msra.mxu0 %v222
    %700 = vmatpush.msra.mxu0 %v219
    %701 = vmatpush.msra.mxu0 %v216
    %702 = vmatmul.f32.gmra.mxu0 %v663
    %v703 = vpop.f32.mrf.mxu0
    %v704 = vadd.f32 %v658, %v703
    %705 = vmatmul.f32.gmra.mxu0 %v666
    %v706 = vpop.f32.mrf.mxu0
    %v707 = vadd.f32 %v658, %v706
    %708 = vmatmul.f32.gmra.mxu0 %v669
    %v709 = vpop.f32.mrf.mxu0
    %v710 = vadd.f32 %v658, %v709
    %711 = vmatmul.f32.gmra.mxu0 %v672
    %v712 = vpop.f32.mrf.mxu0
    %v713 = vadd.f32 %v658, %v712
    %714 = vmatmul.f32.gmra.mxu0 %v675
    %v715 = vpop.f32.mrf.mxu0
    %v716 = vadd.f32 %v658, %v715
    %717 = vmatmul.f32.gmra.mxu0 %v678
    %v718 = vpop.f32.mrf.mxu0
    %v719 = vadd.f32 %v658, %v718
    %720 = vmatmul.f32.gmra.mxu0 %v681
    %v721 = vpop.f32.mrf.mxu0
    %v722 = vadd.f32 %v658, %v721
    %723 = vmatmul.f32.gmra.mxu0 %v684
    %v724 = vpop.f32.mrf.mxu0
    %v725 = vadd.f32 %v658, %v724
    %726 = vdwg.mxu0
    %727 = vmatpush.msra.mxu0 0.0
    %728 = vmatpush.msra.mxu0 0.0
    %729 = vmatpush.msra.mxu0 0.0
    %730 = vmatpush.msra.mxu0 0.0
    %731 = vmatpush.msra.mxu0 0.0
    %732 = vmatpush.msra.mxu0 0.0
    %733 = vmatpush.msra.mxu0 0.0
    %734 = vmatpush.msra.mxu0 0.0
    %735 = vmatpush.msra.mxu0 %v278
    %736 = vmatpush.msra.mxu0 %v275
    %737 = vmatpush.msra.mxu0 %v272
    %738 = vmatpush.msra.mxu0 %v269
    %739 = vmatpush.msra.mxu0 %v266
    %740 = vmatpush.msra.mxu0 %v263
    %741 = vmatpush.msra.mxu0 %v260
    %742 = vmatpush.msra.mxu0 %v257
    %743 = vmatmul.f32.gmra.mxu0 %v663
    %v744 = vpop.f32.mrf.mxu0
    %v745 = vadd.f32 %v659, %v744
    %746 = vmatmul.f32.gmra.mxu0 %v666
    %v747 = vpop.f32.mrf.mxu0
    %v748 = vadd.f32 %v659, %v747
    %749 = vmatmul.f32.gmra.mxu0 %v669
    %v750 = vpop.f32.mrf.mxu0
    %v751 = vadd.f32 %v659, %v750
    %752 = vmatmul.f32.gmra.mxu0 %v672
    %v753 = vpop.f32.mrf.mxu0
    %v754 = vadd.f32 %v659, %v753
    %755 = vmatmul.f32.gmra.mxu0 %v675
    %v756 = vpop.f32.mrf.mxu0
    %v757 = vadd.f32 %v659, %v756
    %758 = vmatmul.f32.gmra.mxu0 %v678
    %v759 = vpop.f32.mrf.mxu0
    %v760 = vadd.f32 %v659, %v759
    %761 = vmatmul.f32.gmra.mxu0 %v681
    %v762 = vpop.f32.mrf.mxu0
    %v763 = vadd.f32 %v659, %v762
    %764 = vmatmul.f32.gmra.mxu0 %v684
    %v765 = vpop.f32.mrf.mxu0
    %v766 = vadd.f32 %v659, %v765
    %767 = vdwg.mxu0
    %v768 = vmax.f32 %v704, 0.0
    %v769 = vmax.f32 %v745, 0.0
    %v770 = vmax.f32 %v707, 0.0
    %v771 = vmax.f32 %v748, 0.0
    %v772 = vmax.f32 %v710, 0.0
    %v773 = vmax.f32 %v751, 0.0
    %v774 = vmax.f32 %v713, 0.0
    %v775 = vmax.f32 %v754, 0.0
    %v776 = vmax.f32 %v716, 0.0
    %v777 = vmax.f32 %v757, 0.0
    %v778 = vmax.f32 %v719, 0.0
    %v779 = vmax.f32 %v760, 0.0
    %v780 = vmax.f32 %v722, 0.0
    %v781 = vmax.f32 %v763, 0.0
    %v782 = vmax.f32 %v725, 0.0
    %v783 = vmax.f32 %v766, 0.0
    %v784 = vld [vmem:[#allocation6] sm:$0xff]
    %v785 = vld [vmem:[#allocation6 + $0x8] sm:$0xff]
    %v786 = vld [vmem:[#allocation6 + $0x10] sm:$0xff]
    %v787 = vld [vmem:[#allocation6 + $0x18] sm:$0xff]
    %v788 = vld [vmem:[#allocation6 + $0x20] sm:$0xff]
    %v789 = vld [vmem:[#allocation6 + $0x28] sm:$0xff]
    %v790 = vld [vmem:[#allocation6 + $0x30] sm:$0xff]
    %v791 = vld [vmem:[#allocation6 + $0x38] sm:$0xff]
    %v792 = vld [vmem:[#allocation6 + $0x40] sm:$0xff]
    %v793 = vld [vmem:[#allocation6 + $0x48] sm:$0xff]
    %v794 = vld [vmem:[#allocation6 + $0x50] sm:$0xff]
    %v795 = vld [vmem:[#allocation6 + $0x58] sm:$0xff]
    %v796 = vld [vmem:[#allocation6 + $0x60] sm:$0xff]
    %v797 = vld [vmem:[#allocation6 + $0x68] sm:$0xff]
    %v798 = vld [vmem:[#allocation6 + $0x70] sm:$0xff]
    %v799 = vld [vmem:[#allocation6 + $0x78] sm:$0xff]
    %v800 = vmul.f32 %v768, %v784
    %v801 = vmul.f32 %v769, %v785
    %v802 = vmul.f32 %v770, %v786
    %v803 = vmul.f32 %v771, %v787
    %v804 = vmul.f32 %v772, %v788
    %v805 = vmul.f32 %v773, %v789
    %v806 = vmul.f32 %v774, %v790
    %v807 = vmul.f32 %v775, %v791
    %v808 = vmul.f32 %v776, %v792
    %v809 = vmul.f32 %v777, %v793
    %v810 = vmul.f32 %v778, %v794
    %v811 = vmul.f32 %v779, %v795
    %v812 = vmul.f32 %v780, %v796
    %v813 = vmul.f32 %v781, %v797
    %v814 = vmul.f32 %v782, %v798
    %v815 = vmul.f32 %v783, %v799
    %v816 = vld [vmem:[#allocation9] sm:$0xff]
    %v817 = vld [vmem:[#allocation9 + $0x8] sm:$0xff]
    %v818 = vld [vmem:[#allocation9 + $0x10] sm:$0xff]
    %v819 = vld [vmem:[#allocation9 + $0x18] sm:$0xff]
    %v820 = vld [vmem:[#allocation9 + $0x20] sm:$0xff]
    %v821 = vld [vmem:[#allocation9 + $0x28] sm:$0xff]
    %v822 = vld [vmem:[#allocation9 + $0x30] sm:$0xff]
    %v823 = vld [vmem:[#allocation9 + $0x38] sm:$0xff]
    %v824 = vld [vmem:[#allocation9 + $0x40] sm:$0xff]
    %v825 = vld [vmem:[#allocation9 + $0x48] sm:$0xff]
    %v826 = vld [vmem:[#allocation9 + $0x50] sm:$0xff]
    %v827 = vld [vmem:[#allocation9 + $0x58] sm:$0xff]
    %v828 = vld [vmem:[#allocation9 + $0x60] sm:$0xff]
    %v829 = vld [vmem:[#allocation9 + $0x68] sm:$0xff]
    %v830 = vld [vmem:[#allocation9 + $0x70] sm:$0xff]
    %v831 = vld [vmem:[#allocation9 + $0x78] sm:$0xff]
    %v832 = vld [vmem:[#allocation9 + $0x80] sm:$0xff]
    %v833 = vld [vmem:[#allocation9 + $0x88] sm:$0xff]
    %v834 = vld [vmem:[#allocation9 + $0x90] sm:$0xff]
    %v835 = vld [vmem:[#allocation9 + $0x98] sm:$0xff]
    %v836 = vld [vmem:[#allocation9 + $0xa0] sm:$0xff]
    %v837 = vld [vmem:[#allocation9 + $0xa8] sm:$0xff]
    %v838 = vld [vmem:[#allocation9 + $0xb0] sm:$0xff]
    %v839 = vld [vmem:[#allocation9 + $0xb8] sm:$0xff]
    %v840 = vld [vmem:[#allocation9 + $0xc0] sm:$0xff]
    %v841 = vld [vmem:[#allocation9 + $0xc8] sm:$0xff]
    %v842 = vld [vmem:[#allocation9 + $0xd0] sm:$0xff]
    %v843 = vld [vmem:[#allocation9 + $0xd8] sm:$0xff]
    %v844 = vld [vmem:[#allocation9 + $0xe0] sm:$0xff]
    %v845 = vld [vmem:[#allocation9 + $0xe8] sm:$0xff]
    %v846 = vld [vmem:[#allocation9 + $0xf0] sm:$0xff]
    %v847 = vld [vmem:[#allocation9 + $0xf8] sm:$0xff]
    %v848 = vld [vmem:[#allocation9 + $0x100] sm:$0xff]
    %v849 = vld [vmem:[#allocation9 + $0x108] sm:$0xff]
    %v850 = vld [vmem:[#allocation9 + $0x110] sm:$0xff]
    %v851 = vld [vmem:[#allocation9 + $0x118] sm:$0xff]
    %v852 = vld [vmem:[#allocation9 + $0x120] sm:$0xff]
    %v853 = vld [vmem:[#allocation9 + $0x128] sm:$0xff]
    %v854 = vld [vmem:[#allocation9 + $0x130] sm:$0xff]
    %v855 = vld [vmem:[#allocation9 + $0x138] sm:$0xff]
    %v856 = vld [vmem:[#allocation9 + $0x140] sm:$0xff]
    %v857 = vld [vmem:[#allocation9 + $0x148] sm:$0xff]
    %v858 = vld [vmem:[#allocation9 + $0x150] sm:$0xff]
    %v859 = vld [vmem:[#allocation9 + $0x158] sm:$0xff]
    %v860 = vld [vmem:[#allocation9 + $0x160] sm:$0xff]
    %v861 = vld [vmem:[#allocation9 + $0x168] sm:$0xff]
    %v862 = vld [vmem:[#allocation9 + $0x170] sm:$0xff]
    %v863 = vld [vmem:[#allocation9 + $0x178] sm:$0xff]
    %v864 = vld [vmem:[#allocation9 + $0x180] sm:$0xff]
    %v865 = vld [vmem:[#allocation9 + $0x188] sm:$0xff]
    %v867 = vsel %vm302, %v801, 0
    %v870 = vsel %vm302, %v803, 0
    %v873 = vsel %vm302, %v805, 0
    %v876 = vsel %vm302, %v807, 0
    %v879 = vsel %vm302, %v809, 0
    %v882 = vsel %vm302, %v811, 0
    %v885 = vsel %vm302, %v813, 0
    %v888 = vsel %vm302, %v815, 0
    %890 = vmatpush.msra.mxu0 %v846
    %891 = vmatpush.msra.mxu0 %v844
    %892 = vmatpush.msra.mxu0 %v842
    %893 = vmatpush.msra.mxu0 %v840
    %894 = vmatpush.msra.mxu0 %v838
    %895 = vmatpush.msra.mxu0 %v836
    %896 = vmatpush.msra.mxu0 %v834
    %897 = vmatpush.msra.mxu0 %v832
    %898 = vmatpush.msra.mxu0 %v830
    %899 = vmatpush.msra.mxu0 %v828
    %900 = vmatpush.msra.mxu0 %v826
    %901 = vmatpush.msra.mxu0 %v824
    %902 = vmatpush.msra.mxu0 %v822
    %903 = vmatpush.msra.mxu0 %v820
    %904 = vmatpush.msra.mxu0 %v818
    %905 = vmatpush.msra.mxu0 %v816
    %906 = vmatmul.f32.gmra.mxu0 %v800
    %v907 = vpop.f32.mrf.mxu0
    %v908 = vadd.f32 0.0, %v907
    %909 = vmatmul.f32.gmra.mxu0 %v802
    %v910 = vpop.f32.mrf.mxu0
    %v911 = vadd.f32 0.0, %v910
    %912 = vmatmul.f32.gmra.mxu0 %v804
    %v913 = vpop.f32.mrf.mxu0
    %v914 = vadd.f32 0.0, %v913
    %915 = vmatmul.f32.gmra.mxu0 %v806
    %v916 = vpop.f32.mrf.mxu0
    %v917 = vadd.f32 0.0, %v916
    %918 = vmatmul.f32.gmra.mxu0 %v808
    %v919 = vpop.f32.mrf.mxu0
    %v920 = vadd.f32 0.0, %v919
    %921 = vmatmul.f32.gmra.mxu0 %v810
    %v922 = vpop.f32.mrf.mxu0
    %v923 = vadd.f32 0.0, %v922
    %924 = vmatmul.f32.gmra.mxu0 %v812
    %v925 = vpop.f32.mrf.mxu0
    %v926 = vadd.f32 0.0, %v925
    %927 = vmatmul.f32.gmra.mxu0 %v814
    %v928 = vpop.f32.mrf.mxu0
    %v929 = vadd.f32 0.0, %v928
    %930 = vdwg.mxu0
    %931 = vmatpush.msra.mxu0 0.0
    %932 = vmatpush.msra.mxu0 0.0
    %933 = vmatpush.msra.mxu0 0.0
    %934 = vmatpush.msra.mxu0 0.0
    %935 = vmatpush.msra.mxu0 0.0
    %936 = vmatpush.msra.mxu0 0.0
    %937 = vmatpush.msra.mxu0 0.0
    %938 = vmatpush.msra.mxu0 %v864
    %939 = vmatpush.msra.mxu0 %v862
    %940 = vmatpush.msra.mxu0 %v860
    %941 = vmatpush.msra.mxu0 %v858
    %942 = vmatpush.msra.mxu0 %v856
    %943 = vmatpush.msra.mxu0 %v854
    %944 = vmatpush.msra.mxu0 %v852
    %945 = vmatpush.msra.mxu0 %v850
    %946 = vmatpush.msra.mxu0 %v848
    %947 = vmatmul.f32.gmra.mxu0 %v867
    %v948 = vpop.f32.mrf.mxu0
    %v949 = vadd.f32 %v908, %v948
    %950 = vmatmul.f32.gmra.mxu0 %v870
    %v951 = vpop.f32.mrf.mxu0
    %v952 = vadd.f32 %v911, %v951
    %953 = vmatmul.f32.gmra.mxu0 %v873
    %v954 = vpop.f32.mrf.mxu0
    %v955 = vadd.f32 %v914, %v954
    %956 = vmatmul.f32.gmra.mxu0 %v876
    %v957 = vpop.f32.mrf.mxu0
    %v958 = vadd.f32 %v917, %v957
    %959 = vmatmul.f32.gmra.mxu0 %v879
    %v960 = vpop.f32.mrf.mxu0
    %v961 = vadd.f32 %v920, %v960
    %962 = vmatmul.f32.gmra.mxu0 %v882
    %v963 = vpop.f32.mrf.mxu0
    %v964 = vadd.f32 %v923, %v963
    %965 = vmatmul.f32.gmra.mxu0 %v885
    %v966 = vpop.f32.mrf.mxu0
    %v967 = vadd.f32 %v926, %v966
    %968 = vmatmul.f32.gmra.mxu0 %v888
    %v969 = vpop.f32.mrf.mxu0
    %v970 = vadd.f32 %v929, %v969
    %971 = vdwg.mxu0
    %972 = vmatpush.msra.mxu0 %v847
    %973 = vmatpush.msra.mxu0 %v845
    %974 = vmatpush.msra.mxu0 %v843
    %975 = vmatpush.msra.mxu0 %v841
    %976 = vmatpush.msra.mxu0 %v839
    %977 = vmatpush.msra.mxu0 %v837
    %978 = vmatpush.msra.mxu0 %v835
    %979 = vmatpush.msra.mxu0 %v833
    %980 = vmatpush.msra.mxu0 %v831
    %981 = vmatpush.msra.mxu0 %v829
    %982 = vmatpush.msra.mxu0 %v827
    %983 = vmatpush.msra.mxu0 %v825
    %984 = vmatpush.msra.mxu0 %v823
    %985 = vmatpush.msra.mxu0 %v821
    %986 = vmatpush.msra.mxu0 %v819
    %987 = vmatpush.msra.mxu0 %v817
    %988 = vmatmul.f32.gmra.mxu0 %v800
    %v989 = vpop.f32.mrf.mxu0
    %v990 = vadd.f32 0.0, %v989
    %991 = vmatmul.f32.gmra.mxu0 %v802
    %v992 = vpop.f32.mrf.mxu0
    %v993 = vadd.f32 0.0, %v992
    %994 = vmatmul.f32.gmra.mxu0 %v804
    %v995 = vpop.f32.mrf.mxu0
    %v996 = vadd.f32 0.0, %v995
    %997 = vmatmul.f32.gmra.mxu0 %v806
    %v998 = vpop.f32.mrf.mxu0
    %v999 = vadd.f32 0.0, %v998
    %1000 = vmatmul.f32.gmra.mxu0 %v808
    %v1001 = vpop.f32.mrf.mxu0
    %v1002 = vadd.f32 0.0, %v1001
    %1003 = vmatmul.f32.gmra.mxu0 %v810
    %v1004 = vpop.f32.mrf.mxu0
    %v1005 = vadd.f32 0.0, %v1004
    %1006 = vmatmul.f32.gmra.mxu0 %v812
    %v1007 = vpop.f32.mrf.mxu0
    %v1008 = vadd.f32 0.0, %v1007
    %1009 = vmatmul.f32.gmra.mxu0 %v814
    %v1010 = vpop.f32.mrf.mxu0
    %v1011 = vadd.f32 0.0, %v1010
    %1012 = vdwg.mxu0
    %1013 = vmatpush.msra.mxu0 0.0
    %1014 = vmatpush.msra.mxu0 0.0
    %1015 = vmatpush.msra.mxu0 0.0
    %1016 = vmatpush.msra.mxu0 0.0
    %1017 = vmatpush.msra.mxu0 0.0
    %1018 = vmatpush.msra.mxu0 0.0
    %1019 = vmatpush.msra.mxu0 0.0
    %1020 = vmatpush.msra.mxu0 %v865
    %1021 = vmatpush.msra.mxu0 %v863
    %1022 = vmatpush.msra.mxu0 %v861
    %1023 = vmatpush.msra.mxu0 %v859
    %1024 = vmatpush.msra.mxu0 %v857
    %1025 = vmatpush.msra.mxu0 %v855
    %1026 = vmatpush.msra.mxu0 %v853
    %1027 = vmatpush.msra.mxu0 %v851
    %1028 = vmatpush.msra.mxu0 %v849
    %1029 = vmatmul.f32.gmra.mxu0 %v867
    %v1030 = vpop.f32.mrf.mxu0
    %v1031 = vadd.f32 %v990, %v1030
    %1032 = vmatmul.f32.gmra.mxu0 %v870
    %v1033 = vpop.f32.mrf.mxu0
    %v1034 = vadd.f32 %v993, %v1033
    %1035 = vmatmul.f32.gmra.mxu0 %v873
    %v1036 = vpop.f32.mrf.mxu0
    %v1037 = vadd.f32 %v996, %v1036
    %1038 = vmatmul.f32.gmra.mxu0 %v876
    %v1039 = vpop.f32.mrf.mxu0
    %v1040 = vadd.f32 %v999, %v1039
    %1041 = vmatmul.f32.gmra.mxu0 %v879
    %v1042 = vpop.f32.mrf.mxu0
    %v1043 = vadd.f32 %v1002, %v1042
    %1044 = vmatmul.f32.gmra.mxu0 %v882
    %v1045 = vpop.f32.mrf.mxu0
    %v1046 = vadd.f32 %v1005, %v1045
    %1047 = vmatmul.f32.gmra.mxu0 %v885
    %v1048 = vpop.f32.mrf.mxu0
    %v1049 = vadd.f32 %v1008, %v1048
    %1050 = vmatmul.f32.gmra.mxu0 %v888
    %v1051 = vpop.f32.mrf.mxu0
    %v1052 = vadd.f32 %v1011, %v1051
    %1053 = vdwg.mxu0
    %v1054 = vld [vmem:[%s10] sm:$0x3]
    %v1056 = vperm.slane %v1054, 0
    %v1057 = vperm.slane %v1054, 1
    %v1060 = vmul.f32 %v949, %v1056
    %v1061 = vmul.f32 %v1031, %v1057
    %v1062 = vmul.f32 %v952, %v1056
    %v1063 = vmul.f32 %v1034, %v1057
    %v1064 = vmul.f32 %v955, %v1056
    %v1065 = vmul.f32 %v1037, %v1057
    %v1066 = vmul.f32 %v958, %v1056
    %v1067 = vmul.f32 %v1040, %v1057
    %v1068 = vmul.f32 %v961, %v1056
    %v1069 = vmul.f32 %v1043, %v1057
    %v1070 = vmul.f32 %v964, %v1056
    %v1071 = vmul.f32 %v1046, %v1057
    %v1072 = vmul.f32 %v967, %v1056
    %v1073 = vmul.f32 %v1049, %v1057
    %v1074 = vmul.f32 %v970, %v1056
    %v1075 = vmul.f32 %v1052, %v1057
    %v1076 = vsel %vm302, %v1061, 0.0
    %v1077 = vadd.f32 %v1060, %v1076
    %1078 = vadd.xlane.f32.xlu0 %v1077
    %v1079 = vpop.xlane.xlu0 %1078
    %v1080 = vsel %vm302, %v1063, 0.0
    %v1081 = vadd.f32 %v1062, %v1080
    %1082 = vadd.xlane.f32.xlu0 %v1081
    %v1083 = vpop.xlane.xlu0 %1082
    %v1084 = vsel %vm302, %v1065, 0.0
    %v1085 = vadd.f32 %v1064, %v1084
    %1086 = vadd.xlane.f32.xlu0 %v1085
    %v1087 = vpop.xlane.xlu0 %1086
    %v1088 = vsel %vm302, %v1067, 0.0
    %v1089 = vadd.f32 %v1066, %v1088
    %1090 = vadd.xlane.f32.xlu0 %v1089
    %v1091 = vpop.xlane.xlu0 %1090
    %v1092 = vsel %vm302, %v1069, 0.0
    %v1093 = vadd.f32 %v1068, %v1092
    %1094 = vadd.xlane.f32.xlu0 %v1093
    %v1095 = vpop.xlane.xlu0 %1094
    %v1096 = vsel %vm302, %v1071, 0.0
    %v1097 = vadd.f32 %v1070, %v1096
    %1098 = vadd.xlane.f32.xlu0 %v1097
    %v1099 = vpop.xlane.xlu0 %1098
    %v1100 = vsel %vm302, %v1073, 0.0
    %v1101 = vadd.f32 %v1072, %v1100
    %1102 = vadd.xlane.f32.xlu0 %v1101
    %v1103 = vpop.xlane.xlu0 %1102
    %v1104 = vsel %vm302, %v1075, 0.0
    %v1105 = vadd.f32 %v1074, %v1104
    %1106 = vadd.xlane.f32.xlu0 %v1105
    %v1107 = vpop.xlane.xlu0 %1106
    %v1108 = vld [vmem:[%s9] sm:$0x3]
    %v1110 = vperm.slane %v1108, 0
    %v1111 = vperm.slane %v1108, 1
    %v1113 = vsel %vm302, %v1111, 0
    %v1116 = vsel %vm302, %v1031, 0
    %v1119 = vsel %vm302, %v1034, 0
    %v1122 = vsel %vm302, %v1037, 0
    %v1125 = vsel %vm302, %v1040, 0
    %v1128 = vsel %vm302, %v1043, 0
    %v1131 = vsel %vm302, %v1046, 0
    %v1134 = vsel %vm302, %v1049, 0
    %v1137 = vsel %vm302, %v1052, 0
    %1139 = vmatpush.xpose.msra.mxu0 0.0
    %1140 = vmatpush.xpose.msra.mxu0 0.0
    %1141 = vmatpush.xpose.msra.mxu0 0.0
    %1142 = vmatpush.xpose.msra.mxu0 0.0
    %1143 = vmatpush.xpose.msra.mxu0 0.0
    %1144 = vmatpush.xpose.msra.mxu0 0.0
    %1145 = vmatpush.xpose.msra.mxu0 0.0
    %1146 = vmatpush.xpose.msra.mxu0 0.0
    %1147 = vmatpush.xpose.msra.mxu0 %v970
    %1148 = vmatpush.xpose.msra.mxu0 %v967
    %1149 = vmatpush.xpose.msra.mxu0 %v964
    %1150 = vmatpush.xpose.msra.mxu0 %v961
    %1151 = vmatpush.xpose.msra.mxu0 %v958
    %1152 = vmatpush.xpose.msra.mxu0 %v955
    %1153 = vmatpush.xpose.msra.mxu0 %v952
    %1154 = vmatpush.xpose.msra.mxu0 %v949
    %1155 = vmatmul.f32.gmra.mxu0 %v1110
    %v1156 = vpop.f32.mrf.mxu0
    %v1157 = vadd.f32 0.0, %v1156
    %1158 = vdwg.mxu0
    %1159 = vmatpush.xpose.msra.mxu0 0.0
    %1160 = vmatpush.xpose.msra.mxu0 0.0
    %1161 = vmatpush.xpose.msra.mxu0 0.0
    %1162 = vmatpush.xpose.msra.mxu0 0.0
    %1163 = vmatpush.xpose.msra.mxu0 0.0
    %1164 = vmatpush.xpose.msra.mxu0 0.0
    %1165 = vmatpush.xpose.msra.mxu0 0.0
    %1166 = vmatpush.xpose.msra.mxu0 0.0
    %1167 = vmatpush.xpose.msra.mxu0 %v1137
    %1168 = vmatpush.xpose.msra.mxu0 %v1134
    %1169 = vmatpush.xpose.msra.mxu0 %v1131
    %1170 = vmatpush.xpose.msra.mxu0 %v1128
    %1171 = vmatpush.xpose.msra.mxu0 %v1125
    %1172 = vmatpush.xpose.msra.mxu0 %v1122
    %1173 = vmatpush.xpose.msra.mxu0 %v1119
    %1174 = vmatpush.xpose.msra.mxu0 %v1116
    %1175 = vmatmul.f32.gmra.mxu0 %v1113
    %v1176 = vpop.f32.mrf.mxu0
    %v1177 = vadd.f32 %v1157, %v1176
    %1178 = vdwg.mxu0
    %v1179 = vperm.slane %v1177, 0
    %v1180 = vadd.f32 %v1079, %v1179
    %v1181 = vadd.f32 %v1083, %v1179
    %v1182 = vadd.f32 %v1087, %v1179
    %v1183 = vadd.f32 %v1091, %v1179
    %v1184 = vadd.f32 %v1095, %v1179
    %v1185 = vadd.f32 %v1099, %v1179
    %v1186 = vadd.f32 %v1103, %v1179
    %v1187 = vadd.f32 %v1107, %v1179
    %vm1188 = vcmp.ge.f32.partialorder %v1180, 0.0
    %vm1189 = vcmp.ge.f32.partialorder %v1181, 0.0
    %vm1190 = vcmp.ge.f32.partialorder %v1182, 0.0
    %vm1191 = vcmp.ge.f32.partialorder %v1183, 0.0
    %vm1192 = vcmp.ge.f32.partialorder %v1184, 0.0
    %vm1193 = vcmp.ge.f32.partialorder %v1185, 0.0
    %vm1194 = vcmp.ge.f32.partialorder %v1186, 0.0
    %vm1195 = vcmp.ge.f32.partialorder %v1187, 0.0
    %v1196 = vmul.f32 %v1180, 0.2
    %v1197 = vmul.f32 %v1181, 0.2
    %v1198 = vmul.f32 %v1182, 0.2
    %v1199 = vmul.f32 %v1183, 0.2
    %v1200 = vmul.f32 %v1184, 0.2
    %v1201 = vmul.f32 %v1185, 0.2
    %v1202 = vmul.f32 %v1186, 0.2
    %v1203 = vmul.f32 %v1187, 0.2
    %v1204 = vsel %vm1188, %v1180, %v1196
    %v1205 = vsel %vm1189, %v1181, %v1197
    %v1206 = vsel %vm1190, %v1182, %v1198
    %v1207 = vsel %vm1191, %v1183, %v1199
    %v1208 = vsel %vm1192, %v1184, %v1200
    %v1209 = vsel %vm1193, %v1185, %v1201
    %v1210 = vsel %vm1194, %v1186, %v1202
    %v1211 = vsel %vm1195, %v1187, %v1203
    %v1212 = vsel %vm439, %v1204, -1e+30
    %v1213 = vsel %vm440, %v1205, -1e+30
    %v1214 = vsel %vm441, %v1206, -1e+30
    %v1215 = vsel %vm442, %v1207, -1e+30
    %v1216 = vsel %vm443, %v1208, -1e+30
    %v1217 = vsel %vm444, %v1209, -1e+30
    %v1218 = vsel %vm445, %v1210, -1e+30
    %v1219 = vsel %vm446, %v1211, -1e+30
    %v1220 = vsel %vm455, %v1212, -inf
    %1221 = vmax.xlane.f32.xlu0 %v1220
    %v1222 = vpop.xlane.xlu0 %1221
    %v1223 = vsel %vm455, %v1213, -inf
    %1224 = vmax.xlane.f32.xlu0 %v1223
    %v1225 = vpop.xlane.xlu0 %1224
    %v1226 = vsel %vm455, %v1214, -inf
    %1227 = vmax.xlane.f32.xlu0 %v1226
    %v1228 = vpop.xlane.xlu0 %1227
    %v1229 = vsel %vm455, %v1215, -inf
    %1230 = vmax.xlane.f32.xlu0 %v1229
    %v1231 = vpop.xlane.xlu0 %1230
    %v1232 = vsel %vm455, %v1216, -inf
    %1233 = vmax.xlane.f32.xlu0 %v1232
    %v1234 = vpop.xlane.xlu0 %1233
    %v1235 = vsel %vm455, %v1217, -inf
    %1236 = vmax.xlane.f32.xlu0 %v1235
    %v1237 = vpop.xlane.xlu0 %1236
    %v1238 = vsel %vm455, %v1218, -inf
    %1239 = vmax.xlane.f32.xlu0 %v1238
    %v1240 = vpop.xlane.xlu0 %1239
    %v1241 = vsel %vm455, %v1219, -inf
    %1242 = vmax.xlane.f32.xlu0 %v1241
    %v1243 = vpop.xlane.xlu0 %1242
    %v1244 = vsub.f32 %v1212, %v1222
    %v1245 = vsub.f32 %v1213, %v1225
    %v1246 = vsub.f32 %v1214, %v1228
    %v1247 = vsub.f32 %v1215, %v1231
    %v1248 = vsub.f32 %v1216, %v1234
    %v1249 = vsub.f32 %v1217, %v1237
    %v1250 = vsub.f32 %v1218, %v1240
    %v1251 = vsub.f32 %v1219, %v1243
    %v1252 = vmul.f32 %v1244, 1.442695
    %v1253 = vpow.pop %v1252
    %v1254 = vmul.f32 %v1245, 1.442695
    %v1255 = vpow.pop %v1254
    %v1256 = vmul.f32 %v1246, 1.442695
    %v1257 = vpow.pop %v1256
    %v1258 = vmul.f32 %v1247, 1.442695
    %v1259 = vpow.pop %v1258
    %v1260 = vmul.f32 %v1248, 1.442695
    %v1261 = vpow.pop %v1260
    %v1262 = vmul.f32 %v1249, 1.442695
    %v1263 = vpow.pop %v1262
    %v1264 = vmul.f32 %v1250, 1.442695
    %v1265 = vpow.pop %v1264
    %v1266 = vmul.f32 %v1251, 1.442695
    %v1267 = vpow.pop %v1266
    %v1268 = vmul.f32 %v1253, %v153
    %v1269 = vmul.f32 %v1255, %v154
    %v1270 = vmul.f32 %v1257, %v155
    %v1271 = vmul.f32 %v1259, %v156
    %v1272 = vmul.f32 %v1261, %v157
    %v1273 = vmul.f32 %v1263, %v158
    %v1274 = vmul.f32 %v1265, %v159
    %v1275 = vmul.f32 %v1267, %v160
    %v1276 = vsel %vm455, %v1268, 0.0
    %1277 = vadd.xlane.f32.xlu0 %v1276
    %v1278 = vpop.xlane.xlu0 %1277
    %v1279 = vsel %vm455, %v1269, 0.0
    %1280 = vadd.xlane.f32.xlu0 %v1279
    %v1281 = vpop.xlane.xlu0 %1280
    %v1282 = vsel %vm455, %v1270, 0.0
    %1283 = vadd.xlane.f32.xlu0 %v1282
    %v1284 = vpop.xlane.xlu0 %1283
    %v1285 = vsel %vm455, %v1271, 0.0
    %1286 = vadd.xlane.f32.xlu0 %v1285
    %v1287 = vpop.xlane.xlu0 %1286
    %v1288 = vsel %vm455, %v1272, 0.0
    %1289 = vadd.xlane.f32.xlu0 %v1288
    %v1290 = vpop.xlane.xlu0 %1289
    %v1291 = vsel %vm455, %v1273, 0.0
    %1292 = vadd.xlane.f32.xlu0 %v1291
    %v1293 = vpop.xlane.xlu0 %1292
    %v1294 = vsel %vm455, %v1274, 0.0
    %1295 = vadd.xlane.f32.xlu0 %v1294
    %v1296 = vpop.xlane.xlu0 %1295
    %v1297 = vsel %vm455, %v1275, 0.0
    %1298 = vadd.xlane.f32.xlu0 %v1297
    %v1299 = vpop.xlane.xlu0 %1298
    %v1300 = vrcp.pop %v1278
    %v1301 = vmul.f32 %v1278, %v1300
    %v1302 = vsub.f32 1.0, %v1301
    %v1303 = vmul.f32 %v1300, %v1302
    %v1304 = vadd.f32 %v1300, %v1303
    %vm1305 = vweird.f32 %v1278
    %vm1306 = vweird.f32 %v1300
    %vm1307 = vmor %vm1305, %vm1306
    %v1308 = vsel %vm1307, %v1300, %v1304
    %v1309 = vand.u32 2147483647, %v1278
    %vm1310 = vcmp.eq.f32.partialorder %v1309, 8.507059e+37
    %v1311 = vand.u32 %v1278, 2147483648
    %v1312 = vor.u32 1.1754944e-38, %v1311
    %v1313 = vsel %vm1310, %v1312, %v1308
    %v1314 = vmul.f32 %v1268, %v1313
    %v1315 = vrcp.pop %v1281
    %v1316 = vmul.f32 %v1281, %v1315
    %v1317 = vsub.f32 1.0, %v1316
    %v1318 = vmul.f32 %v1315, %v1317
    %v1319 = vadd.f32 %v1315, %v1318
    %vm1320 = vweird.f32 %v1281
    %vm1321 = vweird.f32 %v1315
    %vm1322 = vmor %vm1320, %vm1321
    %v1323 = vsel %vm1322, %v1315, %v1319
    %v1324 = vand.u32 2147483647, %v1281
    %vm1325 = vcmp.eq.f32.partialorder %v1324, 8.507059e+37
    %v1326 = vand.u32 %v1281, 2147483648
    %v1327 = vor.u32 1.1754944e-38, %v1326
    %v1328 = vsel %vm1325, %v1327, %v1323
    %v1329 = vmul.f32 %v1269, %v1328
    %v1330 = vrcp.pop %v1284
    %v1331 = vmul.f32 %v1284, %v1330
    %v1332 = vsub.f32 1.0, %v1331
    %v1333 = vmul.f32 %v1330, %v1332
    %v1334 = vadd.f32 %v1330, %v1333
    %vm1335 = vweird.f32 %v1284
    %vm1336 = vweird.f32 %v1330
    %vm1337 = vmor %vm1335, %vm1336
    %v1338 = vsel %vm1337, %v1330, %v1334
    %v1339 = vand.u32 2147483647, %v1284
    %vm1340 = vcmp.eq.f32.partialorder %v1339, 8.507059e+37
    %v1341 = vand.u32 %v1284, 2147483648
    %v1342 = vor.u32 1.1754944e-38, %v1341
    %v1343 = vsel %vm1340, %v1342, %v1338
    %v1344 = vmul.f32 %v1270, %v1343
    %v1345 = vrcp.pop %v1287
    %v1346 = vmul.f32 %v1287, %v1345
    %v1347 = vsub.f32 1.0, %v1346
    %v1348 = vmul.f32 %v1345, %v1347
    %v1349 = vadd.f32 %v1345, %v1348
    %vm1350 = vweird.f32 %v1287
    %vm1351 = vweird.f32 %v1345
    %vm1352 = vmor %vm1350, %vm1351
    %v1353 = vsel %vm1352, %v1345, %v1349
    %v1354 = vand.u32 2147483647, %v1287
    %vm1355 = vcmp.eq.f32.partialorder %v1354, 8.507059e+37
    %v1356 = vand.u32 %v1287, 2147483648
    %v1357 = vor.u32 1.1754944e-38, %v1356
    %v1358 = vsel %vm1355, %v1357, %v1353
    %v1359 = vmul.f32 %v1271, %v1358
    %v1360 = vrcp.pop %v1290
    %v1361 = vmul.f32 %v1290, %v1360
    %v1362 = vsub.f32 1.0, %v1361
    %v1363 = vmul.f32 %v1360, %v1362
    %v1364 = vadd.f32 %v1360, %v1363
    %vm1365 = vweird.f32 %v1290
    %vm1366 = vweird.f32 %v1360
    %vm1367 = vmor %vm1365, %vm1366
    %v1368 = vsel %vm1367, %v1360, %v1364
    %v1369 = vand.u32 2147483647, %v1290
    %vm1370 = vcmp.eq.f32.partialorder %v1369, 8.507059e+37
    %v1371 = vand.u32 %v1290, 2147483648
    %v1372 = vor.u32 1.1754944e-38, %v1371
    %v1373 = vsel %vm1370, %v1372, %v1368
    %v1374 = vmul.f32 %v1272, %v1373
    %v1375 = vrcp.pop %v1293
    %v1376 = vmul.f32 %v1293, %v1375
    %v1377 = vsub.f32 1.0, %v1376
    %v1378 = vmul.f32 %v1375, %v1377
    %v1379 = vadd.f32 %v1375, %v1378
    %vm1380 = vweird.f32 %v1293
    %vm1381 = vweird.f32 %v1375
    %vm1382 = vmor %vm1380, %vm1381
    %v1383 = vsel %vm1382, %v1375, %v1379
    %v1384 = vand.u32 2147483647, %v1293
    %vm1385 = vcmp.eq.f32.partialorder %v1384, 8.507059e+37
    %v1386 = vand.u32 %v1293, 2147483648
    %v1387 = vor.u32 1.1754944e-38, %v1386
    %v1388 = vsel %vm1385, %v1387, %v1383
    %v1389 = vmul.f32 %v1273, %v1388
    %v1390 = vrcp.pop %v1296
    %v1391 = vmul.f32 %v1296, %v1390
    %v1392 = vsub.f32 1.0, %v1391
    %v1393 = vmul.f32 %v1390, %v1392
    %v1394 = vadd.f32 %v1390, %v1393
    %vm1395 = vweird.f32 %v1296
    %vm1396 = vweird.f32 %v1390
    %vm1397 = vmor %vm1395, %vm1396
    %v1398 = vsel %vm1397, %v1390, %v1394
    %v1399 = vand.u32 2147483647, %v1296
    %vm1400 = vcmp.eq.f32.partialorder %v1399, 8.507059e+37
    %v1401 = vand.u32 %v1296, 2147483648
    %v1402 = vor.u32 1.1754944e-38, %v1401
    %v1403 = vsel %vm1400, %v1402, %v1398
    %v1404 = vmul.f32 %v1274, %v1403
    %v1405 = vrcp.pop %v1299
    %v1406 = vmul.f32 %v1299, %v1405
    %v1407 = vsub.f32 1.0, %v1406
    %v1408 = vmul.f32 %v1405, %v1407
    %v1409 = vadd.f32 %v1405, %v1408
    %vm1410 = vweird.f32 %v1299
    %vm1411 = vweird.f32 %v1405
    %vm1412 = vmor %vm1410, %vm1411
    %v1413 = vsel %vm1412, %v1405, %v1409
    %v1414 = vand.u32 2147483647, %v1299
    %vm1415 = vcmp.eq.f32.partialorder %v1414, 8.507059e+37
    %v1416 = vand.u32 %v1299, 2147483648
    %v1417 = vor.u32 1.1754944e-38, %v1416
    %v1418 = vsel %vm1415, %v1417, %v1413
    %v1419 = vmul.f32 %v1275, %v1418
    %v1420 = vld [vmem:[%s11] sm:$0x3]
    %v1422 = vperm.slane %v1420, 0
    %v1423 = vperm.slane %v1420, 1
    %v1427 = vsel %vm455, %v1314, 0
    %v1430 = vsel %vm455, %v1329, 0
    %v1433 = vsel %vm455, %v1344, 0
    %v1436 = vsel %vm455, %v1359, 0
    %v1439 = vsel %vm455, %v1374, 0
    %v1442 = vsel %vm455, %v1389, 0
    %v1445 = vsel %vm455, %v1404, 0
    %v1448 = vsel %vm455, %v1419, 0
    %1450 = vmatpush.msra.mxu0 0.0
    %1451 = vmatpush.msra.mxu0 0.0
    %1452 = vmatpush.msra.mxu0 0.0
    %1453 = vmatpush.msra.mxu0 0.0
    %1454 = vmatpush.msra.mxu0 0.0
    %1455 = vmatpush.msra.mxu0 0.0
    %1456 = vmatpush.msra.mxu0 0.0
    %1457 = vmatpush.msra.mxu0 0.0
    %1458 = vmatpush.msra.mxu0 %v970
    %1459 = vmatpush.msra.mxu0 %v967
    %1460 = vmatpush.msra.mxu0 %v964
    %1461 = vmatpush.msra.mxu0 %v961
    %1462 = vmatpush.msra.mxu0 %v958
    %1463 = vmatpush.msra.mxu0 %v955
    %1464 = vmatpush.msra.mxu0 %v952
    %1465 = vmatpush.msra.mxu0 %v949
    %1466 = vmatmul.f32.gmra.mxu0 %v1427
    %v1467 = vpop.f32.mrf.mxu0
    %v1468 = vadd.f32 %v1422, %v1467
    %1469 = vmatmul.f32.gmra.mxu0 %v1430
    %v1470 = vpop.f32.mrf.mxu0
    %v1471 = vadd.f32 %v1422, %v1470
    %1472 = vmatmul.f32.gmra.mxu0 %v1433
    %v1473 = vpop.f32.mrf.mxu0
    %v1474 = vadd.f32 %v1422, %v1473
    %1475 = vmatmul.f32.gmra.mxu0 %v1436
    %v1476 = vpop.f32.mrf.mxu0
    %v1477 = vadd.f32 %v1422, %v1476
    %1478 = vmatmul.f32.gmra.mxu0 %v1439
    %v1479 = vpop.f32.mrf.mxu0
    %v1480 = vadd.f32 %v1422, %v1479
    %1481 = vmatmul.f32.gmra.mxu0 %v1442
    %v1482 = vpop.f32.mrf.mxu0
    %v1483 = vadd.f32 %v1422, %v1482
    %1484 = vmatmul.f32.gmra.mxu0 %v1445
    %v1485 = vpop.f32.mrf.mxu0
    %v1486 = vadd.f32 %v1422, %v1485
    %1487 = vmatmul.f32.gmra.mxu0 %v1448
    %v1488 = vpop.f32.mrf.mxu0
    %v1489 = vadd.f32 %v1422, %v1488
    %1490 = vdwg.mxu0
    %1491 = vmatpush.msra.mxu0 0.0
    %1492 = vmatpush.msra.mxu0 0.0
    %1493 = vmatpush.msra.mxu0 0.0
    %1494 = vmatpush.msra.mxu0 0.0
    %1495 = vmatpush.msra.mxu0 0.0
    %1496 = vmatpush.msra.mxu0 0.0
    %1497 = vmatpush.msra.mxu0 0.0
    %1498 = vmatpush.msra.mxu0 0.0
    %1499 = vmatpush.msra.mxu0 %v1052
    %1500 = vmatpush.msra.mxu0 %v1049
    %1501 = vmatpush.msra.mxu0 %v1046
    %1502 = vmatpush.msra.mxu0 %v1043
    %1503 = vmatpush.msra.mxu0 %v1040
    %1504 = vmatpush.msra.mxu0 %v1037
    %1505 = vmatpush.msra.mxu0 %v1034
    %1506 = vmatpush.msra.mxu0 %v1031
    %1507 = vmatmul.f32.gmra.mxu0 %v1427
    %v1508 = vpop.f32.mrf.mxu0
    %v1509 = vadd.f32 %v1423, %v1508
    %1510 = vmatmul.f32.gmra.mxu0 %v1430
    %v1511 = vpop.f32.mrf.mxu0
    %v1512 = vadd.f32 %v1423, %v1511
    %1513 = vmatmul.f32.gmra.mxu0 %v1433
    %v1514 = vpop.f32.mrf.mxu0
    %v1515 = vadd.f32 %v1423, %v1514
    %1516 = vmatmul.f32.gmra.mxu0 %v1436
    %v1517 = vpop.f32.mrf.mxu0
    %v1518 = vadd.f32 %v1423, %v1517
    %1519 = vmatmul.f32.gmra.mxu0 %v1439
    %v1520 = vpop.f32.mrf.mxu0
    %v1521 = vadd.f32 %v1423, %v1520
    %1522 = vmatmul.f32.gmra.mxu0 %v1442
    %v1523 = vpop.f32.mrf.mxu0
    %v1524 = vadd.f32 %v1423, %v1523
    %1525 = vmatmul.f32.gmra.mxu0 %v1445
    %v1526 = vpop.f32.mrf.mxu0
    %v1527 = vadd.f32 %v1423, %v1526
    %1528 = vmatmul.f32.gmra.mxu0 %v1448
    %v1529 = vpop.f32.mrf.mxu0
    %v1530 = vadd.f32 %v1423, %v1529
    %1531 = vdwg.mxu0
    %v1532 = vmax.f32 %v1468, 0.0
    %v1533 = vmax.f32 %v1509, 0.0
    %v1534 = vmax.f32 %v1471, 0.0
    %v1535 = vmax.f32 %v1512, 0.0
    %v1536 = vmax.f32 %v1474, 0.0
    %v1537 = vmax.f32 %v1515, 0.0
    %v1538 = vmax.f32 %v1477, 0.0
    %v1539 = vmax.f32 %v1518, 0.0
    %v1540 = vmax.f32 %v1480, 0.0
    %v1541 = vmax.f32 %v1521, 0.0
    %v1542 = vmax.f32 %v1483, 0.0
    %v1543 = vmax.f32 %v1524, 0.0
    %v1544 = vmax.f32 %v1486, 0.0
    %v1545 = vmax.f32 %v1527, 0.0
    %v1546 = vmax.f32 %v1489, 0.0
    %v1547 = vmax.f32 %v1530, 0.0
    %s1548 = scalar_lea.vmem [#allocation6], 128
    %v1549 = vld [vmem:[%s1548] sm:$0xff]
    %v1550 = vld [vmem:[%s1548 + $0x8] sm:$0xff]
    %v1551 = vld [vmem:[%s1548 + $0x10] sm:$0xff]
    %v1552 = vld [vmem:[%s1548 + $0x18] sm:$0xff]
    %v1553 = vld [vmem:[%s1548 + $0x20] sm:$0xff]
    %v1554 = vld [vmem:[%s1548 + $0x28] sm:$0xff]
    %v1555 = vld [vmem:[%s1548 + $0x30] sm:$0xff]
    %v1556 = vld [vmem:[%s1548 + $0x38] sm:$0xff]
    %v1557 = vld [vmem:[%s1548 + $0x40] sm:$0xff]
    %v1558 = vld [vmem:[%s1548 + $0x48] sm:$0xff]
    %v1559 = vld [vmem:[%s1548 + $0x50] sm:$0xff]
    %v1560 = vld [vmem:[%s1548 + $0x58] sm:$0xff]
    %v1561 = vld [vmem:[%s1548 + $0x60] sm:$0xff]
    %v1562 = vld [vmem:[%s1548 + $0x68] sm:$0xff]
    %v1563 = vld [vmem:[%s1548 + $0x70] sm:$0xff]
    %v1564 = vld [vmem:[%s1548 + $0x78] sm:$0xff]
    %v1565 = vmul.f32 %v1532, %v1549
    %v1566 = vmul.f32 %v1533, %v1550
    %v1567 = vmul.f32 %v1534, %v1551
    %v1568 = vmul.f32 %v1535, %v1552
    %v1569 = vmul.f32 %v1536, %v1553
    %v1570 = vmul.f32 %v1537, %v1554
    %v1571 = vmul.f32 %v1538, %v1555
    %v1572 = vmul.f32 %v1539, %v1556
    %v1573 = vmul.f32 %v1540, %v1557
    %v1574 = vmul.f32 %v1541, %v1558
    %v1575 = vmul.f32 %v1542, %v1559
    %v1576 = vmul.f32 %v1543, %v1560
    %v1577 = vmul.f32 %v1544, %v1561
    %v1578 = vmul.f32 %v1545, %v1562
    %v1579 = vmul.f32 %v1546, %v1563
    %v1580 = vmul.f32 %v1547, %v1564
    %v1581 = vld [vmem:[#allocation11] sm:$0xff]
    %v1582 = vld [vmem:[#allocation11 + $0x8] sm:$0xff]
    %v1583 = vld [vmem:[#allocation11 + $0x10] sm:$0xff]
    %v1584 = vld [vmem:[#allocation11 + $0x18] sm:$0xff]
    %v1585 = vld [vmem:[#allocation11 + $0x20] sm:$0xff]
    %v1586 = vld [vmem:[#allocation11 + $0x28] sm:$0xff]
    %v1587 = vld [vmem:[#allocation11 + $0x30] sm:$0xff]
    %v1588 = vld [vmem:[#allocation11 + $0x38] sm:$0xff]
    %v1589 = vld [vmem:[#allocation11 + $0x40] sm:$0xff]
    %v1590 = vld [vmem:[#allocation11 + $0x48] sm:$0xff]
    %v1591 = vld [vmem:[#allocation11 + $0x50] sm:$0xff]
    %v1592 = vld [vmem:[#allocation11 + $0x58] sm:$0xff]
    %v1593 = vld [vmem:[#allocation11 + $0x60] sm:$0xff]
    %v1594 = vld [vmem:[#allocation11 + $0x68] sm:$0xff]
    %v1595 = vld [vmem:[#allocation11 + $0x70] sm:$0xff]
    %v1596 = vld [vmem:[#allocation11 + $0x78] sm:$0xff]
    %v1597 = vld [vmem:[#allocation11 + $0x80] sm:$0xff]
    %v1598 = vld [vmem:[#allocation11 + $0x88] sm:$0xff]
    %v1599 = vld [vmem:[#allocation11 + $0x90] sm:$0xff]
    %v1600 = vld [vmem:[#allocation11 + $0x98] sm:$0xff]
    %v1601 = vld [vmem:[#allocation11 + $0xa0] sm:$0xff]
    %v1602 = vld [vmem:[#allocation11 + $0xa8] sm:$0xff]
    %v1603 = vld [vmem:[#allocation11 + $0xb0] sm:$0xff]
    %v1604 = vld [vmem:[#allocation11 + $0xb8] sm:$0xff]
    %v1605 = vld [vmem:[#allocation11 + $0xc0] sm:$0xff]
    %v1606 = vld [vmem:[#allocation11 + $0xc8] sm:$0xff]
    %v1607 = vld [vmem:[#allocation11 + $0xd0] sm:$0xff]
    %v1608 = vld [vmem:[#allocation11 + $0xd8] sm:$0xff]
    %v1609 = vld [vmem:[#allocation11 + $0xe0] sm:$0xff]
    %v1610 = vld [vmem:[#allocation11 + $0xe8] sm:$0xff]
    %v1611 = vld [vmem:[#allocation11 + $0xf0] sm:$0xff]
    %v1612 = vld [vmem:[#allocation11 + $0xf8] sm:$0xff]
    %v1613 = vld [vmem:[#allocation11 + $0x100] sm:$0xff]
    %v1614 = vld [vmem:[#allocation11 + $0x108] sm:$0xff]
    %v1615 = vld [vmem:[#allocation11 + $0x110] sm:$0xff]
    %v1616 = vld [vmem:[#allocation11 + $0x118] sm:$0xff]
    %v1617 = vld [vmem:[#allocation11 + $0x120] sm:$0xff]
    %v1618 = vld [vmem:[#allocation11 + $0x128] sm:$0xff]
    %v1619 = vld [vmem:[#allocation11 + $0x130] sm:$0xff]
    %v1620 = vld [vmem:[#allocation11 + $0x138] sm:$0xff]
    %v1621 = vld [vmem:[#allocation11 + $0x140] sm:$0xff]
    %v1622 = vld [vmem:[#allocation11 + $0x148] sm:$0xff]
    %v1623 = vld [vmem:[#allocation11 + $0x150] sm:$0xff]
    %v1624 = vld [vmem:[#allocation11 + $0x158] sm:$0xff]
    %v1625 = vld [vmem:[#allocation11 + $0x160] sm:$0xff]
    %v1626 = vld [vmem:[#allocation11 + $0x168] sm:$0xff]
    %v1627 = vld [vmem:[#allocation11 + $0x170] sm:$0xff]
    %v1628 = vld [vmem:[#allocation11 + $0x178] sm:$0xff]
    %v1629 = vld [vmem:[#allocation11 + $0x180] sm:$0xff]
    %v1630 = vld [vmem:[#allocation11 + $0x188] sm:$0xff]
    %v1632 = vsel %vm302, %v1566, 0
    %v1635 = vsel %vm302, %v1568, 0
    %v1638 = vsel %vm302, %v1570, 0
    %v1641 = vsel %vm302, %v1572, 0
    %v1644 = vsel %vm302, %v1574, 0
    %v1647 = vsel %vm302, %v1576, 0
    %v1650 = vsel %vm302, %v1578, 0
    %v1653 = vsel %vm302, %v1580, 0
    %1655 = vmatpush.msra.mxu0 %v1611
    %1656 = vmatpush.msra.mxu0 %v1609
    %1657 = vmatpush.msra.mxu0 %v1607
    %1658 = vmatpush.msra.mxu0 %v1605
    %1659 = vmatpush.msra.mxu0 %v1603
    %1660 = vmatpush.msra.mxu0 %v1601
    %1661 = vmatpush.msra.mxu0 %v1599
    %1662 = vmatpush.msra.mxu0 %v1597
    %1663 = vmatpush.msra.mxu0 %v1595
    %1664 = vmatpush.msra.mxu0 %v1593
    %1665 = vmatpush.msra.mxu0 %v1591
    %1666 = vmatpush.msra.mxu0 %v1589
    %1667 = vmatpush.msra.mxu0 %v1587
    %1668 = vmatpush.msra.mxu0 %v1585
    %1669 = vmatpush.msra.mxu0 %v1583
    %1670 = vmatpush.msra.mxu0 %v1581
    %1671 = vmatmul.f32.gmra.mxu0 %v1565
    %v1672 = vpop.f32.mrf.mxu0
    %v1673 = vadd.f32 0.0, %v1672
    %1674 = vmatmul.f32.gmra.mxu0 %v1567
    %v1675 = vpop.f32.mrf.mxu0
    %v1676 = vadd.f32 0.0, %v1675
    %1677 = vmatmul.f32.gmra.mxu0 %v1569
    %v1678 = vpop.f32.mrf.mxu0
    %v1679 = vadd.f32 0.0, %v1678
    %1680 = vmatmul.f32.gmra.mxu0 %v1571
    %v1681 = vpop.f32.mrf.mxu0
    %v1682 = vadd.f32 0.0, %v1681
    %1683 = vmatmul.f32.gmra.mxu0 %v1573
    %v1684 = vpop.f32.mrf.mxu0
    %v1685 = vadd.f32 0.0, %v1684
    %1686 = vmatmul.f32.gmra.mxu0 %v1575
    %v1687 = vpop.f32.mrf.mxu0
    %v1688 = vadd.f32 0.0, %v1687
    %1689 = vmatmul.f32.gmra.mxu0 %v1577
    %v1690 = vpop.f32.mrf.mxu0
    %v1691 = vadd.f32 0.0, %v1690
    %1692 = vmatmul.f32.gmra.mxu0 %v1579
    %v1693 = vpop.f32.mrf.mxu0
    %v1694 = vadd.f32 0.0, %v1693
    %1695 = vdwg.mxu0
    %1696 = vmatpush.msra.mxu0 0.0
    %1697 = vmatpush.msra.mxu0 0.0
    %1698 = vmatpush.msra.mxu0 0.0
    %1699 = vmatpush.msra.mxu0 0.0
    %1700 = vmatpush.msra.mxu0 0.0
    %1701 = vmatpush.msra.mxu0 0.0
    %1702 = vmatpush.msra.mxu0 0.0
    %1703 = vmatpush.msra.mxu0 %v1629
    %1704 = vmatpush.msra.mxu0 %v1627
    %1705 = vmatpush.msra.mxu0 %v1625
    %1706 = vmatpush.msra.mxu0 %v1623
    %1707 = vmatpush.msra.mxu0 %v1621
    %1708 = vmatpush.msra.mxu0 %v1619
    %1709 = vmatpush.msra.mxu0 %v1617
    %1710 = vmatpush.msra.mxu0 %v1615
    %1711 = vmatpush.msra.mxu0 %v1613
    %1712 = vmatmul.f32.gmra.mxu0 %v1632
    %v1713 = vpop.f32.mrf.mxu0
    %v1714 = vadd.f32 %v1673, %v1713
    %1715 = vmatmul.f32.gmra.mxu0 %v1635
    %v1716 = vpop.f32.mrf.mxu0
    %v1717 = vadd.f32 %v1676, %v1716
    %1718 = vmatmul.f32.gmra.mxu0 %v1638
    %v1719 = vpop.f32.mrf.mxu0
    %v1720 = vadd.f32 %v1679, %v1719
    %1721 = vmatmul.f32.gmra.mxu0 %v1641
    %v1722 = vpop.f32.mrf.mxu0
    %v1723 = vadd.f32 %v1682, %v1722
    %1724 = vmatmul.f32.gmra.mxu0 %v1644
    %v1725 = vpop.f32.mrf.mxu0
    %v1726 = vadd.f32 %v1685, %v1725
    %1727 = vmatmul.f32.gmra.mxu0 %v1647
    %v1728 = vpop.f32.mrf.mxu0
    %v1729 = vadd.f32 %v1688, %v1728
    %1730 = vmatmul.f32.gmra.mxu0 %v1650
    %v1731 = vpop.f32.mrf.mxu0
    %v1732 = vadd.f32 %v1691, %v1731
    %1733 = vmatmul.f32.gmra.mxu0 %v1653
    %v1734 = vpop.f32.mrf.mxu0
    %v1735 = vadd.f32 %v1694, %v1734
    %1736 = vdwg.mxu0
    %1737 = vmatpush.msra.mxu0 %v1612
    %1738 = vmatpush.msra.mxu0 %v1610
    %1739 = vmatpush.msra.mxu0 %v1608
    %1740 = vmatpush.msra.mxu0 %v1606
    %1741 = vmatpush.msra.mxu0 %v1604
    %1742 = vmatpush.msra.mxu0 %v1602
    %1743 = vmatpush.msra.mxu0 %v1600
    %1744 = vmatpush.msra.mxu0 %v1598
    %1745 = vmatpush.msra.mxu0 %v1596
    %1746 = vmatpush.msra.mxu0 %v1594
    %1747 = vmatpush.msra.mxu0 %v1592
    %1748 = vmatpush.msra.mxu0 %v1590
    %1749 = vmatpush.msra.mxu0 %v1588
    %1750 = vmatpush.msra.mxu0 %v1586
    %1751 = vmatpush.msra.mxu0 %v1584
    %1752 = vmatpush.msra.mxu0 %v1582
    %1753 = vmatmul.f32.gmra.mxu0 %v1565
    %v1754 = vpop.f32.mrf.mxu0
    %v1755 = vadd.f32 0.0, %v1754
    %1756 = vmatmul.f32.gmra.mxu0 %v1567
    %v1757 = vpop.f32.mrf.mxu0
    %v1758 = vadd.f32 0.0, %v1757
    %1759 = vmatmul.f32.gmra.mxu0 %v1569
    %v1760 = vpop.f32.mrf.mxu0
    %v1761 = vadd.f32 0.0, %v1760
    %1762 = vmatmul.f32.gmra.mxu0 %v1571
    %v1763 = vpop.f32.mrf.mxu0
    %v1764 = vadd.f32 0.0, %v1763
    %1765 = vmatmul.f32.gmra.mxu0 %v1573
    %v1766 = vpop.f32.mrf.mxu0
    %v1767 = vadd.f32 0.0, %v1766
    %1768 = vmatmul.f32.gmra.mxu0 %v1575
    %v1769 = vpop.f32.mrf.mxu0
    %v1770 = vadd.f32 0.0, %v1769
    %1771 = vmatmul.f32.gmra.mxu0 %v1577
    %v1772 = vpop.f32.mrf.mxu0
    %v1773 = vadd.f32 0.0, %v1772
    %1774 = vmatmul.f32.gmra.mxu0 %v1579
    %v1775 = vpop.f32.mrf.mxu0
    %v1776 = vadd.f32 0.0, %v1775
    %1777 = vdwg.mxu0
    %1778 = vmatpush.msra.mxu0 0.0
    %1779 = vmatpush.msra.mxu0 0.0
    %1780 = vmatpush.msra.mxu0 0.0
    %1781 = vmatpush.msra.mxu0 0.0
    %1782 = vmatpush.msra.mxu0 0.0
    %1783 = vmatpush.msra.mxu0 0.0
    %1784 = vmatpush.msra.mxu0 0.0
    %1785 = vmatpush.msra.mxu0 %v1630
    %1786 = vmatpush.msra.mxu0 %v1628
    %1787 = vmatpush.msra.mxu0 %v1626
    %1788 = vmatpush.msra.mxu0 %v1624
    %1789 = vmatpush.msra.mxu0 %v1622
    %1790 = vmatpush.msra.mxu0 %v1620
    %1791 = vmatpush.msra.mxu0 %v1618
    %1792 = vmatpush.msra.mxu0 %v1616
    %1793 = vmatpush.msra.mxu0 %v1614
    %1794 = vmatmul.f32.gmra.mxu0 %v1632
    %v1795 = vpop.f32.mrf.mxu0
    %v1796 = vadd.f32 %v1755, %v1795
    %1797 = vmatmul.f32.gmra.mxu0 %v1635
    %v1798 = vpop.f32.mrf.mxu0
    %v1799 = vadd.f32 %v1758, %v1798
    %1800 = vmatmul.f32.gmra.mxu0 %v1638
    %v1801 = vpop.f32.mrf.mxu0
    %v1802 = vadd.f32 %v1761, %v1801
    %1803 = vmatmul.f32.gmra.mxu0 %v1641
    %v1804 = vpop.f32.mrf.mxu0
    %v1805 = vadd.f32 %v1764, %v1804
    %1806 = vmatmul.f32.gmra.mxu0 %v1644
    %v1807 = vpop.f32.mrf.mxu0
    %v1808 = vadd.f32 %v1767, %v1807
    %1809 = vmatmul.f32.gmra.mxu0 %v1647
    %v1810 = vpop.f32.mrf.mxu0
    %v1811 = vadd.f32 %v1770, %v1810
    %1812 = vmatmul.f32.gmra.mxu0 %v1650
    %v1813 = vpop.f32.mrf.mxu0
    %v1814 = vadd.f32 %v1773, %v1813
    %1815 = vmatmul.f32.gmra.mxu0 %v1653
    %v1816 = vpop.f32.mrf.mxu0
    %v1817 = vadd.f32 %v1776, %v1816
    %1818 = vdwg.mxu0
    %v1819 = vld [vmem:[%s14] sm:$0x3]
    %v1821 = vperm.slane %v1819, 0
    %v1822 = vperm.slane %v1819, 1
    %v1825 = vmul.f32 %v1714, %v1821
    %v1826 = vmul.f32 %v1796, %v1822
    %v1827 = vmul.f32 %v1717, %v1821
    %v1828 = vmul.f32 %v1799, %v1822
    %v1829 = vmul.f32 %v1720, %v1821
    %v1830 = vmul.f32 %v1802, %v1822
    %v1831 = vmul.f32 %v1723, %v1821
    %v1832 = vmul.f32 %v1805, %v1822
    %v1833 = vmul.f32 %v1726, %v1821
    %v1834 = vmul.f32 %v1808, %v1822
    %v1835 = vmul.f32 %v1729, %v1821
    %v1836 = vmul.f32 %v1811, %v1822
    %v1837 = vmul.f32 %v1732, %v1821
    %v1838 = vmul.f32 %v1814, %v1822
    %v1839 = vmul.f32 %v1735, %v1821
    %v1840 = vmul.f32 %v1817, %v1822
    %v1841 = vsel %vm302, %v1826, 0.0
    %v1842 = vadd.f32 %v1825, %v1841
    %1843 = vadd.xlane.f32.xlu0 %v1842
    %v1844 = vpop.xlane.xlu0 %1843
    %v1845 = vsel %vm302, %v1828, 0.0
    %v1846 = vadd.f32 %v1827, %v1845
    %1847 = vadd.xlane.f32.xlu0 %v1846
    %v1848 = vpop.xlane.xlu0 %1847
    %v1849 = vsel %vm302, %v1830, 0.0
    %v1850 = vadd.f32 %v1829, %v1849
    %1851 = vadd.xlane.f32.xlu0 %v1850
    %v1852 = vpop.xlane.xlu0 %1851
    %v1853 = vsel %vm302, %v1832, 0.0
    %v1854 = vadd.f32 %v1831, %v1853
    %1855 = vadd.xlane.f32.xlu0 %v1854
    %v1856 = vpop.xlane.xlu0 %1855
    %v1857 = vsel %vm302, %v1834, 0.0
    %v1858 = vadd.f32 %v1833, %v1857
    %1859 = vadd.xlane.f32.xlu0 %v1858
    %v1860 = vpop.xlane.xlu0 %1859
    %v1861 = vsel %vm302, %v1836, 0.0
    %v1862 = vadd.f32 %v1835, %v1861
    %1863 = vadd.xlane.f32.xlu0 %v1862
    %v1864 = vpop.xlane.xlu0 %1863
    %v1865 = vsel %vm302, %v1838, 0.0
    %v1866 = vadd.f32 %v1837, %v1865
    %1867 = vadd.xlane.f32.xlu0 %v1866
    %v1868 = vpop.xlane.xlu0 %1867
    %v1869 = vsel %vm302, %v1840, 0.0
    %v1870 = vadd.f32 %v1839, %v1869
    %1871 = vadd.xlane.f32.xlu0 %v1870
    %v1872 = vpop.xlane.xlu0 %1871
    %v1873 = vld [vmem:[%s13] sm:$0x3]
    %v1875 = vperm.slane %v1873, 0
    %v1876 = vperm.slane %v1873, 1
    %v1878 = vsel %vm302, %v1876, 0
    %v1881 = vsel %vm302, %v1796, 0
    %v1884 = vsel %vm302, %v1799, 0
    %v1887 = vsel %vm302, %v1802, 0
    %v1890 = vsel %vm302, %v1805, 0
    %v1893 = vsel %vm302, %v1808, 0
    %v1896 = vsel %vm302, %v1811, 0
    %v1899 = vsel %vm302, %v1814, 0
    %v1902 = vsel %vm302, %v1817, 0
    %1904 = vmatpush.xpose.msra.mxu0 0.0
    %1905 = vmatpush.xpose.msra.mxu0 0.0
    %1906 = vmatpush.xpose.msra.mxu0 0.0
    %1907 = vmatpush.xpose.msra.mxu0 0.0
    %1908 = vmatpush.xpose.msra.mxu0 0.0
    %1909 = vmatpush.xpose.msra.mxu0 0.0
    %1910 = vmatpush.xpose.msra.mxu0 0.0
    %1911 = vmatpush.xpose.msra.mxu0 0.0
    %1912 = vmatpush.xpose.msra.mxu0 %v1735
    %1913 = vmatpush.xpose.msra.mxu0 %v1732
    %1914 = vmatpush.xpose.msra.mxu0 %v1729
    %1915 = vmatpush.xpose.msra.mxu0 %v1726
    %1916 = vmatpush.xpose.msra.mxu0 %v1723
    %1917 = vmatpush.xpose.msra.mxu0 %v1720
    %1918 = vmatpush.xpose.msra.mxu0 %v1717
    %1919 = vmatpush.xpose.msra.mxu0 %v1714
    %1920 = vmatmul.f32.gmra.mxu0 %v1875
    %v1921 = vpop.f32.mrf.mxu0
    %v1922 = vadd.f32 0.0, %v1921
    %1923 = vdwg.mxu0
    %1924 = vmatpush.xpose.msra.mxu0 0.0
    %1925 = vmatpush.xpose.msra.mxu0 0.0
    %1926 = vmatpush.xpose.msra.mxu0 0.0
    %1927 = vmatpush.xpose.msra.mxu0 0.0
    %1928 = vmatpush.xpose.msra.mxu0 0.0
    %1929 = vmatpush.xpose.msra.mxu0 0.0
    %1930 = vmatpush.xpose.msra.mxu0 0.0
    %1931 = vmatpush.xpose.msra.mxu0 0.0
    %1932 = vmatpush.xpose.msra.mxu0 %v1902
    %1933 = vmatpush.xpose.msra.mxu0 %v1899
    %1934 = vmatpush.xpose.msra.mxu0 %v1896
    %1935 = vmatpush.xpose.msra.mxu0 %v1893
    %1936 = vmatpush.xpose.msra.mxu0 %v1890
    %1937 = vmatpush.xpose.msra.mxu0 %v1887
    %1938 = vmatpush.xpose.msra.mxu0 %v1884
    %1939 = vmatpush.xpose.msra.mxu0 %v1881
    %1940 = vmatmul.f32.gmra.mxu0 %v1878
    %v1941 = vpop.f32.mrf.mxu0
    %v1942 = vadd.f32 %v1922, %v1941
    %1943 = vdwg.mxu0
    %v1944 = vperm.slane %v1942, 0
    %v1945 = vadd.f32 %v1844, %v1944
    %v1946 = vadd.f32 %v1848, %v1944
    %v1947 = vadd.f32 %v1852, %v1944
    %v1948 = vadd.f32 %v1856, %v1944
    %v1949 = vadd.f32 %v1860, %v1944
    %v1950 = vadd.f32 %v1864, %v1944
    %v1951 = vadd.f32 %v1868, %v1944
    %v1952 = vadd.f32 %v1872, %v1944
    %vm1953 = vcmp.ge.f32.partialorder %v1945, 0.0
    %vm1954 = vcmp.ge.f32.partialorder %v1946, 0.0
    %vm1955 = vcmp.ge.f32.partialorder %v1947, 0.0
    %vm1956 = vcmp.ge.f32.partialorder %v1948, 0.0
    %vm1957 = vcmp.ge.f32.partialorder %v1949, 0.0
    %vm1958 = vcmp.ge.f32.partialorder %v1950, 0.0
    %vm1959 = vcmp.ge.f32.partialorder %v1951, 0.0
    %vm1960 = vcmp.ge.f32.partialorder %v1952, 0.0
    %v1961 = vmul.f32 %v1945, 0.2
    %v1962 = vmul.f32 %v1946, 0.2
    %v1963 = vmul.f32 %v1947, 0.2
    %v1964 = vmul.f32 %v1948, 0.2
    %v1965 = vmul.f32 %v1949, 0.2
    %v1966 = vmul.f32 %v1950, 0.2
    %v1967 = vmul.f32 %v1951, 0.2
    %v1968 = vmul.f32 %v1952, 0.2
    %v1969 = vsel %vm1953, %v1945, %v1961
    %v1970 = vsel %vm1954, %v1946, %v1962
    %v1971 = vsel %vm1955, %v1947, %v1963
    %v1972 = vsel %vm1956, %v1948, %v1964
    %v1973 = vsel %vm1957, %v1949, %v1965
    %v1974 = vsel %vm1958, %v1950, %v1966
    %v1975 = vsel %vm1959, %v1951, %v1967
    %v1976 = vsel %vm1960, %v1952, %v1968
    %v1977 = vsel %vm439, %v1969, -1e+30
    %v1978 = vsel %vm440, %v1970, -1e+30
    %v1979 = vsel %vm441, %v1971, -1e+30
    %v1980 = vsel %vm442, %v1972, -1e+30
    %v1981 = vsel %vm443, %v1973, -1e+30
    %v1982 = vsel %vm444, %v1974, -1e+30
    %v1983 = vsel %vm445, %v1975, -1e+30
    %v1984 = vsel %vm446, %v1976, -1e+30
    %v1985 = vsel %vm455, %v1977, -inf
    %1986 = vmax.xlane.f32.xlu0 %v1985
    %v1987 = vpop.xlane.xlu0 %1986
    %v1988 = vsel %vm455, %v1978, -inf
    %1989 = vmax.xlane.f32.xlu0 %v1988
    %v1990 = vpop.xlane.xlu0 %1989
    %v1991 = vsel %vm455, %v1979, -inf
    %1992 = vmax.xlane.f32.xlu0 %v1991
    %v1993 = vpop.xlane.xlu0 %1992
    %v1994 = vsel %vm455, %v1980, -inf
    %1995 = vmax.xlane.f32.xlu0 %v1994
    %v1996 = vpop.xlane.xlu0 %1995
    %v1997 = vsel %vm455, %v1981, -inf
    %1998 = vmax.xlane.f32.xlu0 %v1997
    %v1999 = vpop.xlane.xlu0 %1998
    %v2000 = vsel %vm455, %v1982, -inf
    %2001 = vmax.xlane.f32.xlu0 %v2000
    %v2002 = vpop.xlane.xlu0 %2001
    %v2003 = vsel %vm455, %v1983, -inf
    %2004 = vmax.xlane.f32.xlu0 %v2003
    %v2005 = vpop.xlane.xlu0 %2004
    %v2006 = vsel %vm455, %v1984, -inf
    %2007 = vmax.xlane.f32.xlu0 %v2006
    %v2008 = vpop.xlane.xlu0 %2007
    %v2009 = vsub.f32 %v1977, %v1987
    %v2010 = vsub.f32 %v1978, %v1990
    %v2011 = vsub.f32 %v1979, %v1993
    %v2012 = vsub.f32 %v1980, %v1996
    %v2013 = vsub.f32 %v1981, %v1999
    %v2014 = vsub.f32 %v1982, %v2002
    %v2015 = vsub.f32 %v1983, %v2005
    %v2016 = vsub.f32 %v1984, %v2008
    %v2017 = vmul.f32 %v2009, 1.442695
    %v2018 = vpow.pop %v2017
    %v2019 = vmul.f32 %v2010, 1.442695
    %v2020 = vpow.pop %v2019
    %v2021 = vmul.f32 %v2011, 1.442695
    %v2022 = vpow.pop %v2021
    %v2023 = vmul.f32 %v2012, 1.442695
    %v2024 = vpow.pop %v2023
    %v2025 = vmul.f32 %v2013, 1.442695
    %v2026 = vpow.pop %v2025
    %v2027 = vmul.f32 %v2014, 1.442695
    %v2028 = vpow.pop %v2027
    %v2029 = vmul.f32 %v2015, 1.442695
    %v2030 = vpow.pop %v2029
    %v2031 = vmul.f32 %v2016, 1.442695
    %v2032 = vpow.pop %v2031
    %v2033 = vmul.f32 %v2018, %v153
    %v2034 = vmul.f32 %v2020, %v154
    %v2035 = vmul.f32 %v2022, %v155
    %v2036 = vmul.f32 %v2024, %v156
    %v2037 = vmul.f32 %v2026, %v157
    %v2038 = vmul.f32 %v2028, %v158
    %v2039 = vmul.f32 %v2030, %v159
    %v2040 = vmul.f32 %v2032, %v160
    %v2041 = vsel %vm455, %v2033, 0.0
    %2042 = vadd.xlane.f32.xlu0 %v2041
    %v2043 = vpop.xlane.xlu0 %2042
    %v2044 = vsel %vm455, %v2034, 0.0
    %2045 = vadd.xlane.f32.xlu0 %v2044
    %v2046 = vpop.xlane.xlu0 %2045
    %v2047 = vsel %vm455, %v2035, 0.0
    %2048 = vadd.xlane.f32.xlu0 %v2047
    %v2049 = vpop.xlane.xlu0 %2048
    %v2050 = vsel %vm455, %v2036, 0.0
    %2051 = vadd.xlane.f32.xlu0 %v2050
    %v2052 = vpop.xlane.xlu0 %2051
    %v2053 = vsel %vm455, %v2037, 0.0
    %2054 = vadd.xlane.f32.xlu0 %v2053
    %v2055 = vpop.xlane.xlu0 %2054
    %v2056 = vsel %vm455, %v2038, 0.0
    %2057 = vadd.xlane.f32.xlu0 %v2056
    %v2058 = vpop.xlane.xlu0 %2057
    %v2059 = vsel %vm455, %v2039, 0.0
    %2060 = vadd.xlane.f32.xlu0 %v2059
    %v2061 = vpop.xlane.xlu0 %2060
    %v2062 = vsel %vm455, %v2040, 0.0
    %2063 = vadd.xlane.f32.xlu0 %v2062
    %v2064 = vpop.xlane.xlu0 %2063
    %v2065 = vrcp.pop %v2043
    %v2066 = vmul.f32 %v2043, %v2065
    %v2067 = vsub.f32 1.0, %v2066
    %v2068 = vmul.f32 %v2065, %v2067
    %v2069 = vadd.f32 %v2065, %v2068
    %vm2070 = vweird.f32 %v2043
    %vm2071 = vweird.f32 %v2065
    %vm2072 = vmor %vm2070, %vm2071
    %v2073 = vsel %vm2072, %v2065, %v2069
    %v2074 = vand.u32 2147483647, %v2043
    %vm2075 = vcmp.eq.f32.partialorder %v2074, 8.507059e+37
    %v2076 = vand.u32 %v2043, 2147483648
    %v2077 = vor.u32 1.1754944e-38, %v2076
    %v2078 = vsel %vm2075, %v2077, %v2073
    %v2079 = vmul.f32 %v2033, %v2078
    %v2080 = vrcp.pop %v2046
    %v2081 = vmul.f32 %v2046, %v2080
    %v2082 = vsub.f32 1.0, %v2081
    %v2083 = vmul.f32 %v2080, %v2082
    %v2084 = vadd.f32 %v2080, %v2083
    %vm2085 = vweird.f32 %v2046
    %vm2086 = vweird.f32 %v2080
    %vm2087 = vmor %vm2085, %vm2086
    %v2088 = vsel %vm2087, %v2080, %v2084
    %v2089 = vand.u32 2147483647, %v2046
    %vm2090 = vcmp.eq.f32.partialorder %v2089, 8.507059e+37
    %v2091 = vand.u32 %v2046, 2147483648
    %v2092 = vor.u32 1.1754944e-38, %v2091
    %v2093 = vsel %vm2090, %v2092, %v2088
    %v2094 = vmul.f32 %v2034, %v2093
    %v2095 = vrcp.pop %v2049
    %v2096 = vmul.f32 %v2049, %v2095
    %v2097 = vsub.f32 1.0, %v2096
    %v2098 = vmul.f32 %v2095, %v2097
    %v2099 = vadd.f32 %v2095, %v2098
    %vm2100 = vweird.f32 %v2049
    %vm2101 = vweird.f32 %v2095
    %vm2102 = vmor %vm2100, %vm2101
    %v2103 = vsel %vm2102, %v2095, %v2099
    %v2104 = vand.u32 2147483647, %v2049
    %vm2105 = vcmp.eq.f32.partialorder %v2104, 8.507059e+37
    %v2106 = vand.u32 %v2049, 2147483648
    %v2107 = vor.u32 1.1754944e-38, %v2106
    %v2108 = vsel %vm2105, %v2107, %v2103
    %v2109 = vmul.f32 %v2035, %v2108
    %v2110 = vrcp.pop %v2052
    %v2111 = vmul.f32 %v2052, %v2110
    %v2112 = vsub.f32 1.0, %v2111
    %v2113 = vmul.f32 %v2110, %v2112
    %v2114 = vadd.f32 %v2110, %v2113
    %vm2115 = vweird.f32 %v2052
    %vm2116 = vweird.f32 %v2110
    %vm2117 = vmor %vm2115, %vm2116
    %v2118 = vsel %vm2117, %v2110, %v2114
    %v2119 = vand.u32 2147483647, %v2052
    %vm2120 = vcmp.eq.f32.partialorder %v2119, 8.507059e+37
    %v2121 = vand.u32 %v2052, 2147483648
    %v2122 = vor.u32 1.1754944e-38, %v2121
    %v2123 = vsel %vm2120, %v2122, %v2118
    %v2124 = vmul.f32 %v2036, %v2123
    %v2125 = vrcp.pop %v2055
    %v2126 = vmul.f32 %v2055, %v2125
    %v2127 = vsub.f32 1.0, %v2126
    %v2128 = vmul.f32 %v2125, %v2127
    %v2129 = vadd.f32 %v2125, %v2128
    %vm2130 = vweird.f32 %v2055
    %vm2131 = vweird.f32 %v2125
    %vm2132 = vmor %vm2130, %vm2131
    %v2133 = vsel %vm2132, %v2125, %v2129
    %v2134 = vand.u32 2147483647, %v2055
    %vm2135 = vcmp.eq.f32.partialorder %v2134, 8.507059e+37
    %v2136 = vand.u32 %v2055, 2147483648
    %v2137 = vor.u32 1.1754944e-38, %v2136
    %v2138 = vsel %vm2135, %v2137, %v2133
    %v2139 = vmul.f32 %v2037, %v2138
    %v2140 = vrcp.pop %v2058
    %v2141 = vmul.f32 %v2058, %v2140
    %v2142 = vsub.f32 1.0, %v2141
    %v2143 = vmul.f32 %v2140, %v2142
    %v2144 = vadd.f32 %v2140, %v2143
    %vm2145 = vweird.f32 %v2058
    %vm2146 = vweird.f32 %v2140
    %vm2147 = vmor %vm2145, %vm2146
    %v2148 = vsel %vm2147, %v2140, %v2144
    %v2149 = vand.u32 2147483647, %v2058
    %vm2150 = vcmp.eq.f32.partialorder %v2149, 8.507059e+37
    %v2151 = vand.u32 %v2058, 2147483648
    %v2152 = vor.u32 1.1754944e-38, %v2151
    %v2153 = vsel %vm2150, %v2152, %v2148
    %v2154 = vmul.f32 %v2038, %v2153
    %v2155 = vrcp.pop %v2061
    %v2156 = vmul.f32 %v2061, %v2155
    %v2157 = vsub.f32 1.0, %v2156
    %v2158 = vmul.f32 %v2155, %v2157
    %v2159 = vadd.f32 %v2155, %v2158
    %vm2160 = vweird.f32 %v2061
    %vm2161 = vweird.f32 %v2155
    %vm2162 = vmor %vm2160, %vm2161
    %v2163 = vsel %vm2162, %v2155, %v2159
    %v2164 = vand.u32 2147483647, %v2061
    %vm2165 = vcmp.eq.f32.partialorder %v2164, 8.507059e+37
    %v2166 = vand.u32 %v2061, 2147483648
    %v2167 = vor.u32 1.1754944e-38, %v2166
    %v2168 = vsel %vm2165, %v2167, %v2163
    %v2169 = vmul.f32 %v2039, %v2168
    %v2170 = vrcp.pop %v2064
    %v2171 = vmul.f32 %v2064, %v2170
    %v2172 = vsub.f32 1.0, %v2171
    %v2173 = vmul.f32 %v2170, %v2172
    %v2174 = vadd.f32 %v2170, %v2173
    %vm2175 = vweird.f32 %v2064
    %vm2176 = vweird.f32 %v2170
    %vm2177 = vmor %vm2175, %vm2176
    %v2178 = vsel %vm2177, %v2170, %v2174
    %v2179 = vand.u32 2147483647, %v2064
    %vm2180 = vcmp.eq.f32.partialorder %v2179, 8.507059e+37
    %v2181 = vand.u32 %v2064, 2147483648
    %v2182 = vor.u32 1.1754944e-38, %v2181
    %v2183 = vsel %vm2180, %v2182, %v2178
    %v2184 = vmul.f32 %v2040, %v2183
    %v2185 = vld [vmem:[%s15] sm:$0x3]
    %v2187 = vperm.slane %v2185, 0
    %v2188 = vperm.slane %v2185, 1
    %v2192 = vsel %vm455, %v2079, 0
    %v2195 = vsel %vm455, %v2094, 0
    %v2198 = vsel %vm455, %v2109, 0
    %v2201 = vsel %vm455, %v2124, 0
    %v2204 = vsel %vm455, %v2139, 0
    %v2207 = vsel %vm455, %v2154, 0
    %v2210 = vsel %vm455, %v2169, 0
    %v2213 = vsel %vm455, %v2184, 0
    %2215 = vmatpush.msra.mxu0 0.0
    %2216 = vmatpush.msra.mxu0 0.0
    %2217 = vmatpush.msra.mxu0 0.0
    %2218 = vmatpush.msra.mxu0 0.0
    %2219 = vmatpush.msra.mxu0 0.0
    %2220 = vmatpush.msra.mxu0 0.0
    %2221 = vmatpush.msra.mxu0 0.0
    %2222 = vmatpush.msra.mxu0 0.0
    %2223 = vmatpush.msra.mxu0 %v1735
    %2224 = vmatpush.msra.mxu0 %v1732
    %2225 = vmatpush.msra.mxu0 %v1729
    %2226 = vmatpush.msra.mxu0 %v1726
    %2227 = vmatpush.msra.mxu0 %v1723
    %2228 = vmatpush.msra.mxu0 %v1720
    %2229 = vmatpush.msra.mxu0 %v1717
    %2230 = vmatpush.msra.mxu0 %v1714
    %2231 = vmatmul.f32.gmra.mxu0 %v2192
    %v2232 = vpop.f32.mrf.mxu0
    %v2233 = vadd.f32 %v2187, %v2232
    %2234 = vmatmul.f32.gmra.mxu0 %v2195
    %v2235 = vpop.f32.mrf.mxu0
    %v2236 = vadd.f32 %v2187, %v2235
    %2237 = vmatmul.f32.gmra.mxu0 %v2198
    %v2238 = vpop.f32.mrf.mxu0
    %v2239 = vadd.f32 %v2187, %v2238
    %2240 = vmatmul.f32.gmra.mxu0 %v2201
    %v2241 = vpop.f32.mrf.mxu0
    %v2242 = vadd.f32 %v2187, %v2241
    %2243 = vmatmul.f32.gmra.mxu0 %v2204
    %v2244 = vpop.f32.mrf.mxu0
    %v2245 = vadd.f32 %v2187, %v2244
    %2246 = vmatmul.f32.gmra.mxu0 %v2207
    %v2247 = vpop.f32.mrf.mxu0
    %v2248 = vadd.f32 %v2187, %v2247
    %2249 = vmatmul.f32.gmra.mxu0 %v2210
    %v2250 = vpop.f32.mrf.mxu0
    %v2251 = vadd.f32 %v2187, %v2250
    %2252 = vmatmul.f32.gmra.mxu0 %v2213
    %v2253 = vpop.f32.mrf.mxu0
    %v2254 = vadd.f32 %v2187, %v2253
    %2255 = vdwg.mxu0
    %2256 = vmatpush.msra.mxu0 0.0
    %2257 = vmatpush.msra.mxu0 0.0
    %2258 = vmatpush.msra.mxu0 0.0
    %2259 = vmatpush.msra.mxu0 0.0
    %2260 = vmatpush.msra.mxu0 0.0
    %2261 = vmatpush.msra.mxu0 0.0
    %2262 = vmatpush.msra.mxu0 0.0
    %2263 = vmatpush.msra.mxu0 0.0
    %2264 = vmatpush.msra.mxu0 %v1817
    %2265 = vmatpush.msra.mxu0 %v1814
    %2266 = vmatpush.msra.mxu0 %v1811
    %2267 = vmatpush.msra.mxu0 %v1808
    %2268 = vmatpush.msra.mxu0 %v1805
    %2269 = vmatpush.msra.mxu0 %v1802
    %2270 = vmatpush.msra.mxu0 %v1799
    %2271 = vmatpush.msra.mxu0 %v1796
    %2272 = vmatmul.f32.gmra.mxu0 %v2192
    %v2273 = vpop.f32.mrf.mxu0
    %v2274 = vadd.f32 %v2188, %v2273
    %2275 = vmatmul.f32.gmra.mxu0 %v2195
    %v2276 = vpop.f32.mrf.mxu0
    %v2277 = vadd.f32 %v2188, %v2276
    %2278 = vmatmul.f32.gmra.mxu0 %v2198
    %v2279 = vpop.f32.mrf.mxu0
    %v2280 = vadd.f32 %v2188, %v2279
    %2281 = vmatmul.f32.gmra.mxu0 %v2201
    %v2282 = vpop.f32.mrf.mxu0
    %v2283 = vadd.f32 %v2188, %v2282
    %2284 = vmatmul.f32.gmra.mxu0 %v2204
    %v2285 = vpop.f32.mrf.mxu0
    %v2286 = vadd.f32 %v2188, %v2285
    %2287 = vmatmul.f32.gmra.mxu0 %v2207
    %v2288 = vpop.f32.mrf.mxu0
    %v2289 = vadd.f32 %v2188, %v2288
    %2290 = vmatmul.f32.gmra.mxu0 %v2210
    %v2291 = vpop.f32.mrf.mxu0
    %v2292 = vadd.f32 %v2188, %v2291
    %2293 = vmatmul.f32.gmra.mxu0 %v2213
    %v2294 = vpop.f32.mrf.mxu0
    %v2295 = vadd.f32 %v2188, %v2294
    %2296 = vdwg.mxu0
    %v2297 = vmax.f32 %v2233, 0.0
    %v2298 = vmax.f32 %v2274, 0.0
    %v2299 = vmax.f32 %v2236, 0.0
    %v2300 = vmax.f32 %v2277, 0.0
    %v2301 = vmax.f32 %v2239, 0.0
    %v2302 = vmax.f32 %v2280, 0.0
    %v2303 = vmax.f32 %v2242, 0.0
    %v2304 = vmax.f32 %v2283, 0.0
    %v2305 = vmax.f32 %v2245, 0.0
    %v2306 = vmax.f32 %v2286, 0.0
    %v2307 = vmax.f32 %v2248, 0.0
    %v2308 = vmax.f32 %v2289, 0.0
    %v2309 = vmax.f32 %v2251, 0.0
    %v2310 = vmax.f32 %v2292, 0.0
    %v2311 = vmax.f32 %v2254, 0.0
    %v2312 = vmax.f32 %v2295, 0.0
    %s2313 = scalar_lea.vmem [#allocation6], 256
    %v2314 = vld [vmem:[%s2313] sm:$0xff]
    %v2315 = vld [vmem:[%s2313 + $0x8] sm:$0xff]
    %v2316 = vld [vmem:[%s2313 + $0x10] sm:$0xff]
    %v2317 = vld [vmem:[%s2313 + $0x18] sm:$0xff]
    %v2318 = vld [vmem:[%s2313 + $0x20] sm:$0xff]
    %v2319 = vld [vmem:[%s2313 + $0x28] sm:$0xff]
    %v2320 = vld [vmem:[%s2313 + $0x30] sm:$0xff]
    %v2321 = vld [vmem:[%s2313 + $0x38] sm:$0xff]
    %v2322 = vld [vmem:[%s2313 + $0x40] sm:$0xff]
    %v2323 = vld [vmem:[%s2313 + $0x48] sm:$0xff]
    %v2324 = vld [vmem:[%s2313 + $0x50] sm:$0xff]
    %v2325 = vld [vmem:[%s2313 + $0x58] sm:$0xff]
    %v2326 = vld [vmem:[%s2313 + $0x60] sm:$0xff]
    %v2327 = vld [vmem:[%s2313 + $0x68] sm:$0xff]
    %v2328 = vld [vmem:[%s2313 + $0x70] sm:$0xff]
    %v2329 = vld [vmem:[%s2313 + $0x78] sm:$0xff]
    %v2330 = vmul.f32 %v2297, %v2314
    %v2331 = vmul.f32 %v2298, %v2315
    %v2332 = vmul.f32 %v2299, %v2316
    %v2333 = vmul.f32 %v2300, %v2317
    %v2334 = vmul.f32 %v2301, %v2318
    %v2335 = vmul.f32 %v2302, %v2319
    %v2336 = vmul.f32 %v2303, %v2320
    %v2337 = vmul.f32 %v2304, %v2321
    %v2338 = vmul.f32 %v2305, %v2322
    %v2339 = vmul.f32 %v2306, %v2323
    %v2340 = vmul.f32 %v2307, %v2324
    %v2341 = vmul.f32 %v2308, %v2325
    %v2342 = vmul.f32 %v2309, %v2326
    %v2343 = vmul.f32 %v2310, %v2327
    %v2344 = vmul.f32 %v2311, %v2328
    %v2345 = vmul.f32 %v2312, %v2329
    %2346 = vst [vmem:[#allocation12] sm:$0xff] %v2330
    %2347 = vst.msk [vmem:[#allocation12 + $0x8] sm:$0xff] %vm302, %v2331
    %2348 = vst [vmem:[#allocation12 + $0x10] sm:$0xff] %v2332
    %2349 = vst.msk [vmem:[#allocation12 + $0x18] sm:$0xff] %vm302, %v2333
    %2350 = vst [vmem:[#allocation12 + $0x20] sm:$0xff] %v2334
    %2351 = vst.msk [vmem:[#allocation12 + $0x28] sm:$0xff] %vm302, %v2335
    %2352 = vst [vmem:[#allocation12 + $0x30] sm:$0xff] %v2336
    %2353 = vst.msk [vmem:[#allocation12 + $0x38] sm:$0xff] %vm302, %v2337
    %2354 = vst [vmem:[#allocation12 + $0x40] sm:$0xff] %v2338
    %2355 = vst.msk [vmem:[#allocation12 + $0x48] sm:$0xff] %vm302, %v2339
    %2356 = vst [vmem:[#allocation12 + $0x50] sm:$0xff] %v2340
    %2357 = vst.msk [vmem:[#allocation12 + $0x58] sm:$0xff] %vm302, %v2341
    %2358 = vst [vmem:[#allocation12 + $0x60] sm:$0xff] %v2342
    %2359 = vst.msk [vmem:[#allocation12 + $0x68] sm:$0xff] %vm302, %v2343
    %2360 = vst [vmem:[#allocation12 + $0x70] sm:$0xff] %v2344
    %2361 = vst.msk [vmem:[#allocation12 + $0x78] sm:$0xff] %vm302, %v2345
    %v2363 = vsel %vm455, %v145, 0
    %v2366 = vsel %vm455, %v146, 0
    %v2369 = vsel %vm455, %v147, 0
    %v2372 = vsel %vm455, %v148, 0
    %v2375 = vsel %vm455, %v149, 0
    %v2378 = vsel %vm455, %v150, 0
    %v2381 = vsel %vm455, %v151, 0
    %v2384 = vsel %vm455, %v152, 0
    %2386 = vmatpush.msra.mxu0 0.0
    %2387 = vmatpush.msra.mxu0 0.0
    %2388 = vmatpush.msra.mxu0 0.0
    %2389 = vmatpush.msra.mxu0 0.0
    %2390 = vmatpush.msra.mxu0 0.0
    %2391 = vmatpush.msra.mxu0 0.0
    %2392 = vmatpush.msra.mxu0 0.0
    %2393 = vmatpush.msra.mxu0 0.0
    %2394 = vmatpush.msra.mxu0 %v2344
    %2395 = vmatpush.msra.mxu0 %v2342
    %2396 = vmatpush.msra.mxu0 %v2340
    %2397 = vmatpush.msra.mxu0 %v2338
    %2398 = vmatpush.msra.mxu0 %v2336
    %2399 = vmatpush.msra.mxu0 %v2334
    %2400 = vmatpush.msra.mxu0 %v2332
    %2401 = vmatpush.msra.mxu0 %v2330
    %2402 = vmatmul.f32.gmra.mxu0 %v2363
    %v2403 = vpop.f32.mrf.mxu0
    %v2404 = vadd.f32 0.0, %v2403
    %2405 = vmatmul.f32.gmra.mxu0 %v2366
    %v2406 = vpop.f32.mrf.mxu0
    %v2407 = vadd.f32 0.0, %v2406
    %2408 = vmatmul.f32.gmra.mxu0 %v2369
    %v2409 = vpop.f32.mrf.mxu0
    %v2410 = vadd.f32 0.0, %v2409
    %2411 = vmatmul.f32.gmra.mxu0 %v2372
    %v2412 = vpop.f32.mrf.mxu0
    %v2413 = vadd.f32 0.0, %v2412
    %2414 = vmatmul.f32.gmra.mxu0 %v2375
    %v2415 = vpop.f32.mrf.mxu0
    %v2416 = vadd.f32 0.0, %v2415
    %2417 = vmatmul.f32.gmra.mxu0 %v2378
    %v2418 = vpop.f32.mrf.mxu0
    %v2419 = vadd.f32 0.0, %v2418
    %2420 = vmatmul.f32.gmra.mxu0 %v2381
    %v2421 = vpop.f32.mrf.mxu0
    %v2422 = vadd.f32 0.0, %v2421
    %2423 = vmatmul.f32.gmra.mxu0 %v2384
    %v2424 = vpop.f32.mrf.mxu0
    %v2425 = vadd.f32 0.0, %v2424
    %2426 = vdwg.mxu0
    %2427 = vmatpush.msra.mxu0 0.0
    %2428 = vmatpush.msra.mxu0 0.0
    %2429 = vmatpush.msra.mxu0 0.0
    %2430 = vmatpush.msra.mxu0 0.0
    %2431 = vmatpush.msra.mxu0 0.0
    %2432 = vmatpush.msra.mxu0 0.0
    %2433 = vmatpush.msra.mxu0 0.0
    %2434 = vmatpush.msra.mxu0 0.0
    %2435 = vmatpush.msra.mxu0 %v2345
    %2436 = vmatpush.msra.mxu0 %v2343
    %2437 = vmatpush.msra.mxu0 %v2341
    %2438 = vmatpush.msra.mxu0 %v2339
    %2439 = vmatpush.msra.mxu0 %v2337
    %2440 = vmatpush.msra.mxu0 %v2335
    %2441 = vmatpush.msra.mxu0 %v2333
    %2442 = vmatpush.msra.mxu0 %v2331
    %2443 = vmatmul.f32.gmra.mxu0 %v2363
    %v2444 = vpop.f32.mrf.mxu0
    %v2445 = vadd.f32 0.0, %v2444
    %2446 = vmatmul.f32.gmra.mxu0 %v2366
    %v2447 = vpop.f32.mrf.mxu0
    %v2448 = vadd.f32 0.0, %v2447
    %2449 = vmatmul.f32.gmra.mxu0 %v2369
    %v2450 = vpop.f32.mrf.mxu0
    %v2451 = vadd.f32 0.0, %v2450
    %2452 = vmatmul.f32.gmra.mxu0 %v2372
    %v2453 = vpop.f32.mrf.mxu0
    %v2454 = vadd.f32 0.0, %v2453
    %2455 = vmatmul.f32.gmra.mxu0 %v2375
    %v2456 = vpop.f32.mrf.mxu0
    %v2457 = vadd.f32 0.0, %v2456
    %2458 = vmatmul.f32.gmra.mxu0 %v2378
    %v2459 = vpop.f32.mrf.mxu0
    %v2460 = vadd.f32 0.0, %v2459
    %2461 = vmatmul.f32.gmra.mxu0 %v2381
    %v2462 = vpop.f32.mrf.mxu0
    %v2463 = vadd.f32 0.0, %v2462
    %2464 = vmatmul.f32.gmra.mxu0 %v2384
    %v2465 = vpop.f32.mrf.mxu0
    %v2466 = vadd.f32 0.0, %v2465
    %2467 = vdwg.mxu0
    %v2468 = vld [vmem:[%s16] sm:$0x3]
    %v2470 = vperm.slane %v2468, 0
    %v2471 = vperm.slane %v2468, 1
    %v2474 = vmul.f32 %v2404, %v2470
    %v2475 = vmul.f32 %v2445, %v2471
    %v2476 = vmul.f32 %v2407, %v2470
    %v2477 = vmul.f32 %v2448, %v2471
    %v2478 = vmul.f32 %v2410, %v2470
    %v2479 = vmul.f32 %v2451, %v2471
    %v2480 = vmul.f32 %v2413, %v2470
    %v2481 = vmul.f32 %v2454, %v2471
    %v2482 = vmul.f32 %v2416, %v2470
    %v2483 = vmul.f32 %v2457, %v2471
    %v2484 = vmul.f32 %v2419, %v2470
    %v2485 = vmul.f32 %v2460, %v2471
    %v2486 = vmul.f32 %v2422, %v2470
    %v2487 = vmul.f32 %v2463, %v2471
    %v2488 = vmul.f32 %v2425, %v2470
    %v2489 = vmul.f32 %v2466, %v2471
    %v2490 = vsel %vm302, %v2475, 0.0
    %v2491 = vadd.f32 %v2474, %v2490
    %2492 = vadd.xlane.f32.xlu0 %v2491
    %v2493 = vpop.xlane.xlu0 %2492
    %v2494 = vsel %vm302, %v2477, 0.0
    %v2495 = vadd.f32 %v2476, %v2494
    %2496 = vadd.xlane.f32.xlu0 %v2495
    %v2497 = vpop.xlane.xlu0 %2496
    %v2498 = vsel %vm302, %v2479, 0.0
    %v2499 = vadd.f32 %v2478, %v2498
    %2500 = vadd.xlane.f32.xlu0 %v2499
    %v2501 = vpop.xlane.xlu0 %2500
    %v2502 = vsel %vm302, %v2481, 0.0
    %v2503 = vadd.f32 %v2480, %v2502
    %2504 = vadd.xlane.f32.xlu0 %v2503
    %v2505 = vpop.xlane.xlu0 %2504
    %v2506 = vsel %vm302, %v2483, 0.0
    %v2507 = vadd.f32 %v2482, %v2506
    %2508 = vadd.xlane.f32.xlu0 %v2507
    %v2509 = vpop.xlane.xlu0 %2508
    %v2510 = vsel %vm302, %v2485, 0.0
    %v2511 = vadd.f32 %v2484, %v2510
    %2512 = vadd.xlane.f32.xlu0 %v2511
    %v2513 = vpop.xlane.xlu0 %2512
    %v2514 = vsel %vm302, %v2487, 0.0
    %v2515 = vadd.f32 %v2486, %v2514
    %2516 = vadd.xlane.f32.xlu0 %v2515
    %v2517 = vpop.xlane.xlu0 %2516
    %v2518 = vsel %vm302, %v2489, 0.0
    %v2519 = vadd.f32 %v2488, %v2518
    %2520 = vadd.xlane.f32.xlu0 %v2519
    %v2521 = vpop.xlane.xlu0 %2520
    %v2522 = vld [vmem:[#allocation2] sm:$0x1]
    %v2524 = vperm.slane %v2522, 0
    %v2526 = vadd.f32 %v2493, %v2524
    %v2527 = vadd.f32 %v2497, %v2524
    %v2528 = vadd.f32 %v2501, %v2524
    %v2529 = vadd.f32 %v2505, %v2524
    %v2530 = vadd.f32 %v2509, %v2524
    %v2531 = vadd.f32 %v2513, %v2524
    %v2532 = vadd.f32 %v2517, %v2524
    %v2533 = vadd.f32 %v2521, %v2524
    %v2534 = vld [vmem:[%s18] sm:$0x3]
    %v2536 = vperm.slane %v2534, 0
    %v2537 = vperm.slane %v2534, 1
    %v2540 = vmul.f32 %v2330, %v2536
    %v2541 = vmul.f32 %v2331, %v2537
    %v2542 = vmul.f32 %v2332, %v2536
    %v2543 = vmul.f32 %v2333, %v2537
    %v2544 = vmul.f32 %v2334, %v2536
    %v2545 = vmul.f32 %v2335, %v2537
    %v2546 = vmul.f32 %v2336, %v2536
    %v2547 = vmul.f32 %v2337, %v2537
    %v2548 = vmul.f32 %v2338, %v2536
    %v2549 = vmul.f32 %v2339, %v2537
    %v2550 = vmul.f32 %v2340, %v2536
    %v2551 = vmul.f32 %v2341, %v2537
    %v2552 = vmul.f32 %v2342, %v2536
    %v2553 = vmul.f32 %v2343, %v2537
    %v2554 = vmul.f32 %v2344, %v2536
    %v2555 = vmul.f32 %v2345, %v2537
    %v2556 = vsel %vm302, %v2541, 0.0
    %v2557 = vadd.f32 %v2540, %v2556
    %2558 = vadd.xlane.f32.xlu0 %v2557
    %v2559 = vpop.xlane.xlu0 %2558
    %v2560 = vsel %vm302, %v2543, 0.0
    %v2561 = vadd.f32 %v2542, %v2560
    %2562 = vadd.xlane.f32.xlu0 %v2561
    %v2563 = vpop.xlane.xlu0 %2562
    %v2564 = vsel %vm302, %v2545, 0.0
    %v2565 = vadd.f32 %v2544, %v2564
    %2566 = vadd.xlane.f32.xlu0 %v2565
    %v2567 = vpop.xlane.xlu0 %2566
    %v2568 = vsel %vm302, %v2547, 0.0
    %v2569 = vadd.f32 %v2546, %v2568
    %2570 = vadd.xlane.f32.xlu0 %v2569
    %v2571 = vpop.xlane.xlu0 %2570
    %v2572 = vsel %vm302, %v2549, 0.0
    %v2573 = vadd.f32 %v2548, %v2572
    %2574 = vadd.xlane.f32.xlu0 %v2573
    %v2575 = vpop.xlane.xlu0 %2574
    %v2576 = vsel %vm302, %v2551, 0.0
    %v2577 = vadd.f32 %v2550, %v2576
    %2578 = vadd.xlane.f32.xlu0 %v2577
    %v2579 = vpop.xlane.xlu0 %2578
    %v2580 = vsel %vm302, %v2553, 0.0
    %v2581 = vadd.f32 %v2552, %v2580
    %2582 = vadd.xlane.f32.xlu0 %v2581
    %v2583 = vpop.xlane.xlu0 %2582
    %v2584 = vsel %vm302, %v2555, 0.0
    %v2585 = vadd.f32 %v2554, %v2584
    %2586 = vadd.xlane.f32.xlu0 %v2585
    %v2587 = vpop.xlane.xlu0 %2586
    %v2588 = vadd.f32 %v2526, %v2559
    %v2589 = vadd.f32 %v2527, %v2563
    %v2590 = vadd.f32 %v2528, %v2567
    %v2591 = vadd.f32 %v2529, %v2571
    %v2592 = vadd.f32 %v2530, %v2575
    %v2593 = vadd.f32 %v2531, %v2579
    %v2594 = vadd.f32 %v2532, %v2583
    %v2595 = vadd.f32 %v2533, %v2587
    %vm2596 = vcmask 7168
    %2597 = vst.msk [vmem:[%s20] sm:$0xff] %vm2596, %v2588
    %2598 = vst.msk [vmem:[%s20 + $0x8] sm:$0xff] %vm2596, %v2589
    %2599 = vst.msk [vmem:[%s20 + $0x10] sm:$0xff] %vm2596, %v2590
    %2600 = vst.msk [vmem:[%s20 + $0x18] sm:$0xff] %vm2596, %v2591
    %2601 = vst.msk [vmem:[%s20 + $0x20] sm:$0xff] %vm2596, %v2592
    %2602 = vst.msk [vmem:[%s20 + $0x28] sm:$0xff] %vm2596, %v2593
    %2603 = vst.msk [vmem:[%s20 + $0x30] sm:$0xff] %vm2596, %v2594
    %2604 = vst.msk [vmem:[%s20 + $0x38] sm:$0xff] %vm2596, %v2595
    // Predicated region
    $region98: #{tpu_custom_call.1} parent=1 // pred_check
      _
    $region99: #{tpu_custom_call.1} parent=1 // pred_check_branch
      %2606 = sbr.rel (0) target = $region101
    $region100: #{tpu_custom_call.1} parent=1 // pred_region
      %2608 = vsyncadd [#allocation5], 0
      %s2609 = sshll.u32 [#allocation12], 4
      %s2610 = int_to_ptr.vmem [resolvable:$true] %s2609
      %s2611 = sshll.u32 %s19, 4
      %s2612 = int_to_ptr.hbm [resolvable:$true] %s2611
      %2617 = dma.vmem_to_hbm [thread:$0]  %s2610, 2048, %s2612, [#allocation5], 256, 256, 16
    $region101: #{tpu_custom_call.1} parent=1 // pred_fallthru
      _
    // Predicated region
    $region102: #{tpu_custom_call.1} parent=1 // pred_check
      _
    $region103: #{tpu_custom_call.1} parent=1 // pred_check_branch
      %2619 = sbr.rel (0) target = $region105
    $region104: #{tpu_custom_call.1} parent=1 // pred_region
      _
    $region105: #{tpu_custom_call.1} parent=1 // pred_fallthru
      _
    // Predicated region
    $region106: #{tpu_custom_call.1} parent=1 // pred_check
      _
    $region107: #{tpu_custom_call.1} parent=1 // pred_check_branch
      %2621 = sbr.rel (0) target = $region109
    $region108: #{tpu_custom_call.1} parent=1 // pred_region
      %2623 = dma.done [#allocation5], 2048
    $region109: #{tpu_custom_call.1} parent=1 // pred_fallthru
      _
    // Predicated region
    $region110: #{tpu_custom_call.1} parent=1 // pred_check
      _
    $region111: #{tpu_custom_call.1} parent=1 // pred_check_branch
      %2625 = sbr.rel (0) target = $region113
    $region112: #{tpu_custom_call.1} parent=1 // pred_region
      _
    $region113: #{tpu_custom_call.1} parent=1 // pred_fallthru
      _
    %2626 = vsyncpa [#allocation4], 1
    %2627 = vsyncpa [#allocation7], 1
    %2628 = vsyncpa [#allocation10], 1
    %2629 = vsyncpa [#allocation5], 1

</llo_original>
